<compile_context>
chip_gen: v5e
topology: v5e:2x2
jax: 0.10.0
libtpu: 0.0.40
codegen_flags: <defaults>
</compile_context>

<pallas_src>
import functools

import jax
import jax.numpy as jnp
from jax.experimental import pallas as pl
from jax.experimental.pallas import tpu as pltpu

NEG_INF = -1e30


def _mask_palette_kernel(x_ref, w1a_ref, w2_ref,
                         m_ref, pal_ref,
                         xa_ref, acc_ref,
                         *, topk, inv_temp):
    """Pass 1: color mask (two 1x1 convs + top-k softmax) + palette accumulation.

    Per grid step (channel-major):
      x_ref  (1, C, T)        w1a_ref (hidden, C+1)   w2_ref (K, hidden)
      m_ref  (1, K, T)        pal_ref (1, C, K)
      xa_ref (C+1, T) f32 scratch (augmented input [x ; 1])
      acc_ref (C+1, K) f32 scratch (rows 0..C-1: palette numerator, row C: denom)
    """
    t = pl.program_id(1)
    last_t = pl.num_programs(1) - 1

    c = x_ref.shape[1]          # C (e.g. 3)
    tile = x_ref.shape[2]       # T (pixel tile)

    # Augmented input [x ; 1]: the ones row lets the conv bias ride the matmul
    # and lets the palette numerator & denominator share one MXU contraction.
    xa_ref[0:c, :] = x_ref[0]
    xa_ref[c:c + 1, :] = jnp.ones((1, tile), jnp.float32)
    xa = xa_ref[...]                                                # (C+1, T)

    # --- color_mask: Conv2d(C,256,1)+bias + ReLU + Conv2d(256,K,1,bias=False)
    # 1x1 convs in channel-major layout are plain matmuls on the MXU.
    h = jnp.dot(w1a_ref[...], xa, preferred_element_type=jnp.float32)
    h = jnp.maximum(h, 0.0)                                         # (hidden, T)
    logits = jnp.dot(w2_ref[...], h, preferred_element_type=jnp.float32)  # (K, T)
    # m.view([B,-1,K,H,W]).mean(dim=1) is a no-op: conv out-channels == K.

    # --- torch.topk along the color (sublane) axis: unrolled argmax + knockout
    k_colors = logits.shape[0]
    row = jax.lax.broadcasted_iota(jnp.int32, logits.shape, dimension=0)  # (K, T)
    sel = jnp.zeros(logits.shape, dtype=jnp.bool_)
    cur = logits                           # carried; only winners are knocked out
    mx0 = None
    for i in range(topk):
        mx = jnp.max(cur, axis=0, keepdims=True)                    # (1, T)
        if i == 0:
            mx0 = mx                       # global max over logits (reused below)
        is_mx = cur == mx
        # tie-break: lowest index first (matches torch.topk ordering)
        first = jnp.min(jnp.where(is_mx, row, k_colors), axis=0, keepdims=True)
        new_sel = row == first
        sel = sel | new_sel
        if i + 1 < topk:
            cur = jnp.where(new_sel, NEG_INF, cur)

    # --- softmax(topk / temp) scattered back + 1e-16 ---
    z = logits if inv_temp == 1.0 else logits * inv_temp
    if inv_temp > 0:
        # temp > 0 => max over the selected z equals the global max (reuse mx0).
        zmax = mx0 if inv_temp == 1.0 else mx0 * inv_temp
    else:
        zmax = jnp.max(jnp.where(sel, z, NEG_INF), axis=0, keepdims=True)
    e = jnp.where(sel, jnp.exp(z - zmax), 0.0)                      # (K, T)
    denom = jnp.sum(e, axis=0, keepdims=True)                       # (1, T) >= 1
    inv = pl.reciprocal(denom, approx=True)                         # EUP slot
    inv = inv * (2.0 - denom * inv)     # one Newton step -> f32-accurate, cheap
    m_tile = e * inv + 1e-16                                        # (K, T)

    m_ref[0] = m_tile

    # --- palette accumulation over pixel tiles, one MXU contraction:
    #     nd[0:C, k] += sum_p x[c,p] m[k,p];  nd[C, k] += sum_p m[k,p]
    nd = jax.lax.dot_general(xa, m_tile, (((1,), (1,)), ((), ())),
                             preferred_element_type=jnp.float32)    # (C+1, K)

    @pl.when(t == 0)
    def _():
        acc_ref[...] = jnp.zeros_like(acc_ref)

    acc_ref[...] += nd

    @pl.when(t == last_t)
    def _():
        acc = acc_ref[...]
        # Exact division: only C*K elements once per image.
        pal_ref[0] = acc[0:c, :] / acc[c:c + 1, :]                  # (C, K)


def _reconstruct_kernel(pal_ref, m_ref, timg_ref):
    """Pass 2 (training branch): timg[c, p] = sum_k pal[c, k] * m[k, p]."""
    timg_ref[0] = jnp.dot(pal_ref[0], m_ref[0], preferred_element_type=jnp.float32)


def _vmem_capacity():
    try:
        info = pltpu.get_tpu_info()
        cap = int(getattr(info, "vmem_capacity_bytes", 64 << 20))
    except Exception:
        cap = 64 << 20
    return max(cap, 32 << 20)


def _pick_tile(hw, target):
    """Largest lane-aligned pixel tile <= target dividing HW (else whole image)."""
    if hw <= target:
        return hw
    t = (target // 128) * 128
    while t >= 128:
        if hw % t == 0:
            return t
        t -= 128
    return hw   # no lane-aligned divisor; fall back to whole image


@functools.partial(jax.jit, static_argnames=("topk", "temp"))
def color_cnn_plus_forward(img, w1, b1, w2, *, topk=4, temp=1.0):
    """img: (B, C, H, W) NCHW float32.  Returns (transformed_img, m, color_palette)
    with the PyTorch module's shapes:
      transformed_img (B,C,H,W), m (B,K,H,W), color_palette (B,C,K,1,1)."""
    B, C, H, W = img.shape
    HW = H * W
    hidden = w1.shape[0]            # 256
    K = w2.shape[0]                 # num_colors
    k_sel = min(topk, K)

    vmem = _vmem_capacity()
    # Pass 1's hidden activation costs ~1 KiB/pixel (256 x f32): 8192-px tiles on
    # 128 MiB parts (v5e/v6e), 4096 on 64 MiB (v7x).  Pass 2 is tiny per pixel ->
    # use a much larger tile to amortize per-step overhead.
    T1 = _pick_tile(HW, 8192 if vmem >= (100 << 20) else 4096)
    T2 = _pick_tile(HW, 32768)
    n_t1 = HW // T1
    n_t2 = HW // T2
    vmem_limit = min(vmem * 3 // 4, 96 << 20)

    # Channel-major operands: plain reshapes, no image-sized transposes.
    x = img.reshape(B, C, HW).astype(jnp.float32)
    # Fold the conv1 bias into an augmented weight: h = [W1 | b1] @ [x ; 1].
    w1a = jnp.concatenate([w1.reshape(hidden, C).astype(jnp.float32),
                           b1.reshape(hidden, 1).astype(jnp.float32)], axis=1)
    w2_m = w2.reshape(K, hidden).astype(jnp.float32)                # (K, hidden)

    kernel1 = functools.partial(_mask_palette_kernel, topk=k_sel,
                                inv_temp=1.0 / float(temp))

    m, pal = pl.pallas_call(
        kernel1,
        out_shape=(
            jax.ShapeDtypeStruct((B, K, HW), jnp.float32),   # m (color mask)
            jax.ShapeDtypeStruct((B, C, K), jnp.float32),    # palette
        ),
        grid_spec=pltpu.PrefetchScalarGridSpec(
            num_scalar_prefetch=0,
            grid=(B, n_t1),
            in_specs=[
                pl.BlockSpec((1, C, T1), lambda b, t: (b, 0, t)),
                pl.BlockSpec((hidden, C + 1), lambda b, t: (0, 0)),
                pl.BlockSpec((K, hidden), lambda b, t: (0, 0)),
            ],
            out_specs=[
                pl.BlockSpec((1, K, T1), lambda b, t: (b, 0, t)),
                pl.BlockSpec((1, C, K), lambda b, t: (b, 0, 0)),   # resident over t
            ],
            scratch_shapes=[
                pltpu.VMEM((C + 1, T1), jnp.float32),  # augmented input [x ; 1]
                pltpu.VMEM((C + 1, K), jnp.float32),   # palette num (rows 0..C-1) / den (row C)
            ],
        ),
        compiler_params=pltpu.CompilerParams(
            dimension_semantics=("parallel", "arbitrary"),
            vmem_limit_bytes=vmem_limit),
    )(x, w1a, w2_m)

    timg = pl.pallas_call(
        _reconstruct_kernel,
        out_shape=jax.ShapeDtypeStruct((B, C, HW), jnp.float32),
        grid_spec=pltpu.PrefetchScalarGridSpec(
            num_scalar_prefetch=0,
            grid=(B, n_t2),
            in_specs=[
                pl.BlockSpec((1, C, K), lambda b, t: (b, 0, 0)),
                pl.BlockSpec((1, K, T2), lambda b, t: (b, 0, t)),
            ],
            out_specs=pl.BlockSpec((1, C, T2), lambda b, t: (b, 0, t)),
        ),
        compiler_params=pltpu.CompilerParams(
            dimension_semantics=("parallel", "parallel"),
            vmem_limit_bytes=vmem_limit),
    )(pal, m)

    transformed_img = timg.reshape(B, C, H, W)
    m_out = m.reshape(B, K, H, W)
    color_palette = pal.reshape(B, C, K, 1, 1)
    return transformed_img, m_out, color_palette


def reference_forward(img, w1, b1, w2, *, topk=4, temp=1.0):
    """Pure-JAX reference mirroring the PyTorch forward (training=True)."""
    B, C, H, W = img.shape
    hidden = w1.shape[0]
    K = w2.shape[0]
    k_sel = min(topk, K)
    h = jnp.einsum('bchw,oc->bohw', img, w1.reshape(hidden, C)) + b1[None, :, None, None]
    h = jnp.maximum(h, 0.0)
    logits = jnp.einsum('bohw,ko->bkhw', h, w2.reshape(K, hidden))    # (B,K,H,W)
    lt = jnp.transpose(logits, (0, 2, 3, 1))                           # (B,H,W,K)
    vals, idx = jax.lax.top_k(lt, k_sel)
    sm = jax.nn.softmax(vals / temp, axis=-1)
    oh = jax.nn.one_hot(idx, K, dtype=lt.dtype)                        # (B,H,W,k,K)
    m = jnp.einsum('bhwjk,bhwj->bhwk', oh, sm) + 1e-16
    m = jnp.transpose(m, (0, 3, 1, 2))                                 # (B,K,H,W)
    num = jnp.einsum('bchw,bkhw->bck', img, m)
    den = jnp.sum(m, axis=(2, 3))                                      # (B,K)
    pal = num / den[:, None, :]                                        # (B,C,K)
    timg = jnp.einsum('bkhw,bck->bchw', m, pal)
    return timg, m, pal.reshape(B, C, K, 1, 1)


if __name__ == "__main__":
    # Small shapes consistent with the module defaults:
    # in_channel=3, hidden=256, num_colors=8, topk=4, temp=1.0, img 2x3x16x16.
    B, C, H, W = 2, 3, 16, 16
    HIDDEN, NUM_COLORS, TOPK, TEMP = 256, 8, 4, 1.0

    key = jax.random.PRNGKey(0)
    k_img, k_w1, k_b1, k_w2 = jax.random.split(key, 4)
    img = jax.random.normal(k_img, (B, C, H, W), dtype=jnp.float32)
    # Deterministic synthetic parameters (shapes from nn.Conv2d in __init__).
    w1 = 0.1 * jax.random.normal(k_w1, (HIDDEN, C, 1, 1), dtype=jnp.float32)
    b1 = 0.1 * jax.random.normal(k_b1, (HIDDEN,), dtype=jnp.float32)
    w2 = 0.1 * jax.random.normal(k_w2, (NUM_COLORS, HIDDEN, 1, 1), dtype=jnp.float32)

    timg, m, pal = color_cnn_plus_forward(img, w1, b1, w2, topk=TOPK, temp=TEMP)
    jax.block_until_ready((timg, m, pal))

    # sanity check against a pure-JAX reference
    r_timg, r_m, r_pal = reference_forward(img, w1, b1, w2, topk=TOPK, temp=TEMP)
    assert timg.shape == (B, C, H, W) and m.shape == (B, NUM_COLORS, H, W)
    assert pal.shape == (B, C, NUM_COLORS, 1, 1)
    assert jnp.allclose(timg, r_timg, rtol=1e-3, atol=1e-4)
    assert jnp.allclose(m, r_m, rtol=1e-3, atol=1e-4)
    assert jnp.allclose(pal, r_pal, rtol=1e-3, atol=1e-4)

    print("KERNEL_OK")
</pallas_src>

<mosaic_0001>
module attributes {stable_mosaic.version = 11 : i64} {
  func.func @_reconstruct_kernel(%arg0: i32, %arg1: i32, %arg2: memref<1x3x8xf32, #tpu.memory_space<vmem>>, %arg3: memref<1x8x256xf32, #tpu.memory_space<vmem>>, %arg4: memref<1x3x256xf32, #tpu.memory_space<vmem>>) attributes {dimension_semantics = [#tpu.dimension_semantics<parallel>, #tpu.dimension_semantics<parallel>], iteration_bounds = array<i64: 2, 1>, scalar_prefetch = 0 : i64, scratch_operands = 0 : i64, tpu.core_type = #tpu.core_type<tc>, window_params = [{transform_indices = @transform_0, window_bounds = array<i64: 1, 3, 8>}, {transform_indices = @transform_1, window_bounds = array<i64: 1, 8, 256>}, {transform_indices = @transform_2, window_bounds = array<i64: 1, 3, 256>}]} {
    %c0 = arith.constant 0 : index
    %c0_0 = arith.constant 0 : index
    %c0_1 = arith.constant 0 : index
    %0 = vector.load %arg2[%c0, %c0_0, %c0_1] : memref<1x3x8xf32, #tpu.memory_space<vmem>>, vector<1x3x8xf32>
    %1 = vector.shape_cast %0 : vector<1x3x8xf32> to vector<3x8xf32>
    %c0_2 = arith.constant 0 : index
    %c0_3 = arith.constant 0 : index
    %c0_4 = arith.constant 0 : index
    %2 = vector.load %arg3[%c0_2, %c0_3, %c0_4] : memref<1x8x256xf32, #tpu.memory_space<vmem>>, vector<1x8x256xf32>
    %3 = vector.shape_cast %2 : vector<1x8x256xf32> to vector<8x256xf32>
    %cst = arith.constant dense<0.000000e+00> : vector<3x256xf32>
    %4 = tpu.matmul %1, %3, %cst {dimension_numbers = #tpu.dot_dimension_numbers<[1], [0], [0], [1], [0, 0, 1, 1], [], []>} : vector<3x8xf32>, vector<8x256xf32>, vector<3x256xf32> -> vector<3x256xf32>
    %c0_5 = arith.constant 0 : index
    %c0_6 = arith.constant 0 : index
    %c0_7 = arith.constant 0 : index
    %5 = vector.load %arg4[%c0_5, %c0_6, %c0_7] : memref<1x3x256xf32, #tpu.memory_space<vmem>>, vector<1x3x256xf32>
    %6 = vector.shape_cast %5 : vector<1x3x256xf32> to vector<3x256xf32>
    %7 = vector.shape_cast %4 : vector<3x256xf32> to vector<1x3x256xf32>
    tpu.vector_store %arg4[%c0_5, %c0_6, %c0_7], %7 {strides = array<i32>} : memref<1x3x256xf32, #tpu.memory_space<vmem>>, vector<1x3x256xf32>,
    return
  }
  func.func @transform_0(%arg0: i32, %arg1: i32) -> (i32, i32, i32) {
    %c0_i32 = arith.constant 0 : i32
    %c0_i32_0 = arith.constant 0 : i32
    %c0_i32_1 = arith.constant 0 : i32
    return %arg0, %c0_i32, %c0_i32_0 : i32, i32, i32
  }
  func.func @transform_1(%arg0: i32, %arg1: i32) -> (i32, i32, i32) {
    %c0_i32 = arith.constant 0 : i32
    %c0_i32_0 = arith.constant 0 : i32
    return %arg0, %c0_i32, %arg1 : i32, i32, i32
  }
  func.func @transform_2(%arg0: i32, %arg1: i32) -> (i32, i32, i32) {
    %c0_i32 = arith.constant 0 : i32
    %c0_i32_0 = arith.constant 0 : i32
    return %arg0, %c0_i32, %arg1 : i32, i32, i32
  }
}

module attributes {stable_mosaic.version = 11 : i64} {
  func.func @_mask_palette_kernel(%arg0: i32, %arg1: i32, %arg2: memref<1x3x256xf32, #tpu.memory_space<vmem>>, %arg3: memref<256x4xf32, #tpu.memory_space<vmem>>, %arg4: memref<8x256xf32, #tpu.memory_space<vmem>>, %arg5: memref<1x8x256xf32, #tpu.memory_space<vmem>>, %arg6: memref<1x3x8xf32, #tpu.memory_space<vmem>>, %arg7: memref<4x256xf32, #tpu.memory_space<vmem>>, %arg8: memref<4x8xf32, #tpu.memory_space<vmem>>) attributes {dimension_semantics = [#tpu.dimension_semantics<parallel>, #tpu.dimension_semantics<arbitrary>], iteration_bounds = array<i64: 2, 1>, scalar_prefetch = 0 : i64, scratch_operands = 2 : i64, tpu.core_type = #tpu.core_type<tc>, window_params = [{transform_indices = @transform_0, window_bounds = array<i64: 1, 3, 256>}, {pipeline_mode = #tpu.pipeline_mode<synchronous>, transform_indices = @transform_1, window_bounds = array<i64: 256, 4>}, {pipeline_mode = #tpu.pipeline_mode<synchronous>, transform_indices = @transform_2, window_bounds = array<i64: 8, 256>}, {transform_indices = @transform_3, window_bounds = array<i64: 1, 8, 256>}, {transform_indices = @transform_4, window_bounds = array<i64: 1, 3, 8>}]} {
    %c0 = arith.constant 0 : index
    %c0_0 = arith.constant 0 : index
    %c0_1 = arith.constant 0 : index
    %0 = vector.load %arg2[%c0, %c0_0, %c0_1] : memref<1x3x256xf32, #tpu.memory_space<vmem>>, vector<1x3x256xf32>
    %1 = vector.shape_cast %0 : vector<1x3x256xf32> to vector<3x256xf32>
    %c0_2 = arith.constant 0 : index
    %c0_3 = arith.constant 0 : index
    %2 = vector.load %arg7[%c0_2, %c0_3] : memref<4x256xf32, #tpu.memory_space<vmem>>, vector<3x256xf32>
    tpu.vector_store %arg7[%c0_2, %c0_3], %1 {strides = array<i32>} : memref<4x256xf32, #tpu.memory_space<vmem>>, vector<3x256xf32>,
    %cst = arith.constant 1.000000e+00 : f32
    %3 = vector.broadcast %cst : f32 to vector<1x256xf32>
    %c3 = arith.constant 3 : index
    %c0_4 = arith.constant 0 : index
    %4 = vector.load %arg7[%c3, %c0_4] : memref<4x256xf32, #tpu.memory_space<vmem>>, vector<1x256xf32>
    tpu.vector_store %arg7[%c3, %c0_4], %3 {strides = array<i32>} : memref<4x256xf32, #tpu.memory_space<vmem>>, vector<1x256xf32>,
    %c0_5 = arith.constant 0 : index
    %c0_6 = arith.constant 0 : index
    %5 = vector.load %arg7[%c0_5, %c0_6] : memref<4x256xf32, #tpu.memory_space<vmem>>, vector<4x256xf32>
    %c0_7 = arith.constant 0 : index
    %c0_8 = arith.constant 0 : index
    %6 = vector.load %arg3[%c0_7, %c0_8] : memref<256x4xf32, #tpu.memory_space<vmem>>, vector<256x4xf32>
    %cst_9 = arith.constant dense<0.000000e+00> : vector<256x256xf32>
    %7 = tpu.matmul %6, %5, %cst_9 {dimension_numbers = #tpu.dot_dimension_numbers<[1], [0], [0], [1], [0, 0, 1, 1], [], []>} : vector<256x4xf32>, vector<4x256xf32>, vector<256x256xf32> -> vector<256x256xf32>
    %cst_10 = arith.constant 0.000000e+00 : f32
    %8 = vector.broadcast %cst_10 : f32 to vector<256x256xf32>
    %9 = arith.maximumf %7, %8 : vector<256x256xf32>
    %c0_11 = arith.constant 0 : index
    %c0_12 = arith.constant 0 : index
    %10 = vector.load %arg4[%c0_11, %c0_12] : memref<8x256xf32, #tpu.memory_space<vmem>>, vector<8x256xf32>
    %cst_13 = arith.constant dense<0.000000e+00> : vector<8x256xf32>
    %11 = tpu.matmul %10, %9, %cst_13 {dimension_numbers = #tpu.dot_dimension_numbers<[1], [0], [0], [1], [0, 0, 1, 1], [], []>} : vector<8x256xf32>, vector<256x256xf32>, vector<8x256xf32> -> vector<8x256xf32>
    %12 = tpu.iota {dimensions = array<i32: 0>} : vector<8x256xi32>
    %false = arith.constant false
    %13 = vector.broadcast %false : i1 to vector<8x256xi1>
    %cst_14 = arith.constant dense<0xFF800000> : vector<256xf32>
    %14 = vector.multi_reduction <maximumf>, %11, %cst_14 [0] : vector<8x256xf32> to vector<256xf32>
    %15 = vector.shape_cast %14 : vector<256xf32> to vector<1x256xf32>
    %16 = vector.broadcast %15 : vector<1x256xf32> to vector<8x256xf32>
    %17 = arith.cmpf oeq, %11, %16 : vector<8x256xf32>
    %c8_i32 = arith.constant 8 : i32
    %18 = vector.broadcast %c8_i32 : i32 to vector<8x256xi32>
    %19 = arith.select %17, %12, %18 : vector<8x256xi1>, vector<8x256xi32>
    %cst_15 = arith.constant dense<2147483647> : vector<256xi32>
    %20 = vector.multi_reduction <minsi>, %19, %cst_15 [0] : vector<8x256xi32> to vector<256xi32>
    %21 = vector.shape_cast %20 : vector<256xi32> to vector<1x256xi32>
    %22 = vector.broadcast %21 : vector<1x256xi32> to vector<8x256xi32>
    %23 = arith.cmpi eq, %12, %22 : vector<8x256xi32>
    %24 = arith.ori %13, %23 : vector<8x256xi1>
    %cst_16 = arith.constant -1.000000e+30 : f32
    %25 = vector.broadcast %cst_16 : f32 to vector<8x256xf32>
    %26 = arith.select %23, %25, %11 : vector<8x256xi1>, vector<8x256xf32>
    %cst_17 = arith.constant dense<0xFF800000> : vector<256xf32>
    %27 = vector.multi_reduction <maximumf>, %26, %cst_17 [0] : vector<8x256xf32> to vector<256xf32>
    %28 = vector.shape_cast %27 : vector<256xf32> to vector<1x256xf32>
    %29 = vector.broadcast %28 : vector<1x256xf32> to vector<8x256xf32>
    %30 = arith.cmpf oeq, %26, %29 : vector<8x256xf32>
    %c8_i32_18 = arith.constant 8 : i32
    %31 = vector.broadcast %c8_i32_18 : i32 to vector<8x256xi32>
    %32 = arith.select %30, %12, %31 : vector<8x256xi1>, vector<8x256xi32>
    %cst_19 = arith.constant dense<2147483647> : vector<256xi32>
    %33 = vector.multi_reduction <minsi>, %32, %cst_19 [0] : vector<8x256xi32> to vector<256xi32>
    %34 = vector.shape_cast %33 : vector<256xi32> to vector<1x256xi32>
    %35 = vector.broadcast %34 : vector<1x256xi32> to vector<8x256xi32>
    %36 = arith.cmpi eq, %12, %35 : vector<8x256xi32>
    %37 = arith.ori %24, %36 : vector<8x256xi1>
    %cst_20 = arith.constant -1.000000e+30 : f32
    %38 = vector.broadcast %cst_20 : f32 to vector<8x256xf32>
    %39 = arith.select %36, %38, %26 : vector<8x256xi1>, vector<8x256xf32>
    %cst_21 = arith.constant dense<0xFF800000> : vector<256xf32>
    %40 = vector.multi_reduction <maximumf>, %39, %cst_21 [0] : vector<8x256xf32> to vector<256xf32>
    %41 = vector.shape_cast %40 : vector<256xf32> to vector<1x256xf32>
    %42 = vector.broadcast %41 : vector<1x256xf32> to vector<8x256xf32>
    %43 = arith.cmpf oeq, %39, %42 : vector<8x256xf32>
    %c8_i32_22 = arith.constant 8 : i32
    %44 = vector.broadcast %c8_i32_22 : i32 to vector<8x256xi32>
    %45 = arith.select %43, %12, %44 : vector<8x256xi1>, vector<8x256xi32>
    %cst_23 = arith.constant dense<2147483647> : vector<256xi32>
    %46 = vector.multi_reduction <minsi>, %45, %cst_23 [0] : vector<8x256xi32> to vector<256xi32>
    %47 = vector.shape_cast %46 : vector<256xi32> to vector<1x256xi32>
    %48 = vector.broadcast %47 : vector<1x256xi32> to vector<8x256xi32>
    %49 = arith.cmpi eq, %12, %48 : vector<8x256xi32>
    %50 = arith.ori %37, %49 : vector<8x256xi1>
    %cst_24 = arith.constant -1.000000e+30 : f32
    %51 = vector.broadcast %cst_24 : f32 to vector<8x256xf32>
    %52 = arith.select %49, %51, %39 : vector<8x256xi1>, vector<8x256xf32>
    %cst_25 = arith.constant dense<0xFF800000> : vector<256xf32>
    %53 = vector.multi_reduction <maximumf>, %52, %cst_25 [0] : vector<8x256xf32> to vector<256xf32>
    %54 = vector.shape_cast %53 : vector<256xf32> to vector<1x256xf32>
    %55 = vector.broadcast %54 : vector<1x256xf32> to vector<8x256xf32>
    %56 = arith.cmpf oeq, %52, %55 : vector<8x256xf32>
    %c8_i32_26 = arith.constant 8 : i32
    %57 = vector.broadcast %c8_i32_26 : i32 to vector<8x256xi32>
    %58 = arith.select %56, %12, %57 : vector<8x256xi1>, vector<8x256xi32>
    %cst_27 = arith.constant dense<2147483647> : vector<256xi32>
    %59 = vector.multi_reduction <minsi>, %58, %cst_27 [0] : vector<8x256xi32> to vector<256xi32>
    %60 = vector.shape_cast %59 : vector<256xi32> to vector<1x256xi32>
    %61 = vector.broadcast %60 : vector<1x256xi32> to vector<8x256xi32>
    %62 = arith.cmpi eq, %12, %61 : vector<8x256xi32>
    %63 = arith.ori %50, %62 : vector<8x256xi1>
    %64 = vector.broadcast %15 : vector<1x256xf32> to vector<8x256xf32>
    %65 = arith.subf %11, %64 : vector<8x256xf32>
    %66 = math.exp %65 : vector<8x256xf32>
    %cst_28 = arith.constant 0.000000e+00 : f32
    %67 = vector.broadcast %cst_28 : f32 to vector<8x256xf32>
    %68 = arith.select %63, %66, %67 : vector<8x256xi1>, vector<8x256xf32>
    %cst_29 = arith.constant dense<0.000000e+00> : vector<256xf32>
    %69 = vector.multi_reduction <add>, %68, %cst_29 [0] : vector<8x256xf32> to vector<256xf32>
    %70 = vector.shape_cast %69 : vector<256xf32> to vector<1x256xf32>
    %71 = tpu.reciprocal %70 {approx = true} : vector<1x256xf32> -> vector<1x256xf32>
    %72 = arith.mulf %70, %71 : vector<1x256xf32>
    %cst_30 = arith.constant 2.000000e+00 : f32
    %73 = vector.broadcast %cst_30 : f32 to vector<1x256xf32>
    %74 = arith.subf %73, %72 : vector<1x256xf32>
    %75 = arith.mulf %71, %74 : vector<1x256xf32>
    %76 = vector.broadcast %75 : vector<1x256xf32> to vector<8x256xf32>
    %77 = arith.mulf %68, %76 : vector<8x256xf32>
    %cst_31 = arith.constant 1.000000e-16 : f32
    %78 = vector.broadcast %cst_31 : f32 to vector<8x256xf32>
    %79 = arith.addf %77, %78 : vector<8x256xf32>
    %c0_32 = arith.constant 0 : index
    %c0_33 = arith.constant 0 : index
    %c0_34 = arith.constant 0 : index
    %80 = vector.load %arg5[%c0_32, %c0_33, %c0_34] : memref<1x8x256xf32, #tpu.memory_space<vmem>>, vector<1x8x256xf32>
    %81 = vector.shape_cast %80 : vector<1x8x256xf32> to vector<8x256xf32>
    %82 = vector.shape_cast %79 : vector<8x256xf32> to vector<1x8x256xf32>
    tpu.vector_store %arg5[%c0_32, %c0_33, %c0_34], %82 {strides = array<i32>} : memref<1x8x256xf32, #tpu.memory_space<vmem>>, vector<1x8x256xf32>,
    %cst_35 = arith.constant dense<0.000000e+00> : vector<4x8xf32>
    %83 = tpu.matmul %5, %79, %cst_35 {dimension_numbers = #tpu.dot_dimension_numbers<[1], [1], [0], [0], [0, 0, 1, 0], [], []>} : vector<4x256xf32>, vector<8x256xf32>, vector<4x8xf32> -> vector<4x8xf32>
    %c0_i32 = arith.constant 0 : i32
    %84 = arith.cmpi eq, %arg1, %c0_i32 : i32
    %85 = arith.extui %84 : i1 to i32
    %c0_i32_36 = arith.constant 0 : i32
    %86 = arith.cmpi ne, %85, %c0_i32_36 : i32
    scf.if %86 {
      %cst_43 = arith.constant 0.000000e+00 : f32
      %93 = vector.broadcast %cst_43 : f32 to vector<4x8xf32>
      %c0_44 = arith.constant 0 : index
      %c0_45 = arith.constant 0 : index
      %94 = vector.load %arg8[%c0_44, %c0_45] : memref<4x8xf32, #tpu.memory_space<vmem>>, vector<4x8xf32>
      tpu.vector_store %arg8[%c0_44, %c0_45], %93 {strides = array<i32>} : memref<4x8xf32, #tpu.memory_space<vmem>>, vector<4x8xf32>,
    } else {
    }
    %c0_37 = arith.constant 0 : index
    %c0_38 = arith.constant 0 : index
    %87 = vector.load %arg8[%c0_37, %c0_38] : memref<4x8xf32, #tpu.memory_space<vmem>>, vector<4x8xf32>
    %88 = arith.addf %87, %83 : vector<4x8xf32>
    %c0_39 = arith.constant 0 : index
    %c0_40 = arith.constant 0 : index
    %89 = vector.load %arg8[%c0_39, %c0_40] : memref<4x8xf32, #tpu.memory_space<vmem>>, vector<4x8xf32>
    tpu.vector_store %arg8[%c0_39, %c0_40], %88 {strides = array<i32>} : memref<4x8xf32, #tpu.memory_space<vmem>>, vector<4x8xf32>,
    %c0_i32_41 = arith.constant 0 : i32
    %90 = arith.cmpi eq, %arg1, %c0_i32_41 : i32
    %91 = arith.extui %90 : i1 to i32
    %c0_i32_42 = arith.constant 0 : i32
    %92 = arith.cmpi ne, %91, %c0_i32_42 : i32
    scf.if %92 {
      %c0_43 = arith.constant 0 : index
      %c0_44 = arith.constant 0 : index
      %93 = vector.load %arg8[%c0_43, %c0_44] : memref<4x8xf32, #tpu.memory_space<vmem>>, vector<4x8xf32>
      %94 = vector.extract_strided_slice %93 {offsets = [0, 0], sizes = [3, 8], strides = [1, 1]} : vector<4x8xf32> to vector<3x8xf32>
      %95 = vector.extract_strided_slice %93 {offsets = [3, 0], sizes = [1, 8], strides = [1, 1]} : vector<4x8xf32> to vector<1x8xf32>
      %96 = vector.broadcast %95 : vector<1x8xf32> to vector<3x8xf32>
      %97 = arith.divf %94, %96 : vector<3x8xf32>
      %c0_45 = arith.constant 0 : index
      %c0_46 = arith.constant 0 : index
      %c0_47 = arith.constant 0 : index
      %98 = vector.load %arg6[%c0_45, %c0_46, %c0_47] : memref<1x3x8xf32, #tpu.memory_space<vmem>>, vector<1x3x8xf32>
      %99 = vector.shape_cast %98 : vector<1x3x8xf32> to vector<3x8xf32>
      %100 = vector.shape_cast %97 : vector<3x8xf32> to vector<1x3x8xf32>
      tpu.vector_store %arg6[%c0_45, %c0_46, %c0_47], %100 {strides = array<i32>} : memref<1x3x8xf32, #tpu.memory_space<vmem>>, vector<1x3x8xf32>,
    } else {
    }
    return
  }
  func.func @transform_0(%arg0: i32, %arg1: i32) -> (i32, i32, i32) {
    %c0_i32 = arith.constant 0 : i32
    %c0_i32_0 = arith.constant 0 : i32
    return %arg0, %c0_i32, %arg1 : i32, i32, i32
  }
  func.func @transform_1(%arg0: i32, %arg1: i32) -> (i32, i32) {
    %c0_i32 = arith.constant 0 : i32
    %c0_i32_0 = arith.constant 0 : i32
    %c0_i32_1 = arith.constant 0 : i32
    return %c0_i32, %c0_i32_0 : i32, i32
  }
  func.func @transform_2(%arg0: i32, %arg1: i32) -> (i32, i32) {
    %c0_i32 = arith.constant 0 : i32
    %c0_i32_0 = arith.constant 0 : i32
    %c0_i32_1 = arith.constant 0 : i32
    return %c0_i32, %c0_i32_0 : i32, i32
  }
  func.func @transform_3(%arg0: i32, %arg1: i32) -> (i32, i32, i32) {
    %c0_i32 = arith.constant 0 : i32
    %c0_i32_0 = arith.constant 0 : i32
    return %arg0, %c0_i32, %arg1 : i32, i32, i32
  }
  func.func @transform_4(%arg0: i32, %arg1: i32) -> (i32, i32, i32) {
    %c0_i32 = arith.constant 0 : i32
    %c0_i32_0 = arith.constant 0 : i32
    %c0_i32_1 = arith.constant 0 : i32
    return %arg0, %c0_i32, %c0_i32_0 : i32, i32, i32
  }
}

</mosaic_0001>

<llo_original>
// kernel: color_cnn_plus_forward.3
$region0: #{color_cnn_plus_forward.3}
  #allocation0 [shape = 'u32[]', space=smem, size = 0x4, offset = 0x4, fixed_abs, tag = 'smem constant byte address 0x4 - core index']
  #allocation1 [shape = 'u32[72,128]{1,0:T(1,128)}', space=vmem, size = 0x9000, scoped, tag = 'internal scratch']
  %s0 = inlined_call_operand.vmem [shape: f32[2,3,8], index: 0, kind: input, shape index: {}]
  %s1 = inlined_call_operand.vmem [shape: f32[2,8,256], index: 1, kind: input, shape index: {}]
  %s2 = inlined_call_operand.vmem [shape: f32[2,3,256], index: 2, kind: output, shape index: {}]
  %s3 = sld [smem:[#allocation0]]
  $region41: #{color_cnn_plus_forward.3} parent=0
    _
  %s5 = ssub.s32 1, %s3
  %s6 = scalar_select 0, %s5, %s3
  loop: start=0, step=1, limit=4
  $region2: #{color_cnn_plus_forward.3} parent=0 // loop_pre_header
    _
  $region3: #{color_cnn_plus_forward.3} parent=0 // loop_header
    %s8 = sphi 0, %s12
    %p9 = scmp.ge.s32.totalorder %s8, 4
    %s15 = sphi 0, %s27
    %s16 = sphi 0, %s23
    %s17 = sphi 0, %s15
    %s18 = sphi 0, %s16
    %s19 = sphi 0, %s17
    %s20 = sphi 0, %s18
    %s30 = sphi 0, %s32
    %s33 = sphi 0, %s30
    %s34 = sphi 0, %s33
    %s50 = sphi 0, %s34
    %s58 = sphi 0, %s60
    %s61 = sphi 0, %s58
    %s62 = sphi 0, %s61
    %s78 = sphi 0, %s62
    %s86 = sphi 0, %s88
    %s89 = sphi 0, %s86
    %s90 = sphi 0, %s89
    %s106 = sphi 0, %s90
  $region4: #{color_cnn_plus_forward.3} parent=0 // loop_header_branch
    %11 = sbr.rel (%p9) target = $region8
  $region5: #{color_cnn_plus_forward.3} parent=0 // loop_body
    %s13 = ssub.s32 %s8, 1
    %s14 = ssub.s32 %s8, 2
    %s21 = sadd.s32 1, %s16
    %p22 = scmp.ge.s32.totalorder %s21, 1
    %s23 = scalar_select %p22, 0, %s21
    %s24 = sadd.s32 1, %s15
    %s25 = scalar_select %p22, %s24, %s15
    %p26 = scmp.ge.s32.totalorder %s25, 2
    %s27 = scalar_select %p26, 0, %s25
    %s28 = ssub.s32 %s15, %s27
    %p29 = scmp.eq.s32.totalorder %s28, 0
    %s31 = sadd.s32 %s30, 1
    %s32 = scalar_select %p29, %s30, %s31
    %p35 = pneg %p29
    %p36 = scmp.eq.s32.totalorder %s8, 1
    %p37 = por %p35, %p36
    %p38 = scmp.ne.s32.totalorder %s30, %s33
    %p39 = scmp.eq.s32.totalorder %s8, 0
    %p40 = por %p38, %p39
    %p41 = scmp.ne.s32.totalorder %s30, %s33
    %p42 = scmp.eq.s32.totalorder %s13, 1
    %p43 = por %p41, %p42
    %p44 = scmp.ne.s32.totalorder %s33, %s34
    %p45 = scmp.eq.s32.totalorder %s13, 0
    %p46 = por %p44, %p45
    %p47 = scmp.ne.s32.totalorder %s33, %s34
    %p48 = scmp.eq.s32.totalorder %s14, 1
    %p49 = por %p47, %p48
    %p51 = scmp.ne.s32.totalorder %s34, %s50
    %p52 = scmp.eq.s32.totalorder %s14, 0
    %p53 = por %p51, %p52
    %s54 = ssub.s32 %s15, %s27
    %s55 = ssub.s32 %s16, %s23
    %s56 = sor.u32 %s54, %s55
    %p57 = scmp.eq.s32.totalorder %s56, 0
    %s59 = sadd.s32 %s58, 1
    %s60 = scalar_select %p57, %s58, %s59
    %p63 = pneg %p57
    %p64 = scmp.eq.s32.totalorder %s8, 1
    %p65 = por %p63, %p64
    %p66 = scmp.ne.s32.totalorder %s58, %s61
    %p67 = scmp.eq.s32.totalorder %s8, 0
    %p68 = por %p66, %p67
    %p69 = scmp.ne.s32.totalorder %s58, %s61
    %p70 = scmp.eq.s32.totalorder %s13, 1
    %p71 = por %p69, %p70
    %p72 = scmp.ne.s32.totalorder %s61, %s62
    %p73 = scmp.eq.s32.totalorder %s13, 0
    %p74 = por %p72, %p73
    %p75 = scmp.ne.s32.totalorder %s61, %s62
    %p76 = scmp.eq.s32.totalorder %s14, 1
    %p77 = por %p75, %p76
    %p79 = scmp.ne.s32.totalorder %s62, %s78
    %p80 = scmp.eq.s32.totalorder %s14, 0
    %p81 = por %p79, %p80
    %s82 = ssub.s32 %s15, %s27
    %s83 = ssub.s32 %s16, %s23
    %s84 = sor.u32 %s82, %s83
    %p85 = scmp.eq.s32.totalorder %s84, 0
    %s87 = sadd.s32 %s86, 1
    %s88 = scalar_select %p85, %s86, %s87
    %p91 = pneg %p85
    %p92 = scmp.eq.s32.totalorder %s8, 1
    %p93 = por %p91, %p92
    %p94 = scmp.ne.s32.totalorder %s86, %s89
    %p95 = scmp.eq.s32.totalorder %s8, 0
    %p96 = por %p94, %p95
    %p97 = scmp.ne.s32.totalorder %s86, %s89
    %p98 = scmp.eq.s32.totalorder %s13, 1
    %p99 = por %p97, %p98
    %p100 = scmp.ne.s32.totalorder %s89, %s90
    %p101 = scmp.eq.s32.totalorder %s13, 0
    %p102 = por %p100, %p101
    %p103 = scmp.ne.s32.totalorder %s89, %s90
    %p104 = scmp.eq.s32.totalorder %s14, 1
    %p105 = por %p103, %p104
    %p107 = scmp.ne.s32.totalorder %s90, %s106
    %p108 = scmp.eq.s32.totalorder %s14, 0
    %p109 = por %p107, %p108
    %p110 = scmp.le.s32.totalorder 1, %s8
    %p111 = scmp.lt.s32.totalorder %s8, 3
    %p112 = pnand %p110, %p111
    %p113 = pneg %p112
    // Predicated region
    $region9: #{color_cnn_plus_forward.3} parent=5 // pred_check
      _
    $region10: #{color_cnn_plus_forward.3} parent=5 // pred_check_branch
      %115 = sbr.rel (%p112) target = $region12
    $region11: #{color_cnn_plus_forward.3} parent=5 // pred_region
      %s116 = ssub.s32 %s8, 1
    $region12: #{color_cnn_plus_forward.3} parent=5 // pred_fallthru
      _
    %p117 = scmp.lt.s32.totalorder %s8, 2
    // Predicated region
    $region13: #{color_cnn_plus_forward.3} parent=5 // pred_check
      %p118 = pneg %p117
    $region14: #{color_cnn_plus_forward.3} parent=5 // pred_check_branch
      %120 = sbr.rel (%p118) target = $region16
    $region15: #{color_cnn_plus_forward.3} parent=5 // pred_region
      // Predicated region
      $region17: #{color_cnn_plus_forward.3} parent=15 // pred_check
        %p121 = pneg %p40
      $region18: #{color_cnn_plus_forward.3} parent=15 // pred_check_branch
        %123 = sbr.rel (%p121) target = $region20
      $region19: #{color_cnn_plus_forward.3} parent=15 // pred_region
        %p124 = scmp.lt.s32.totalorder %s15, 1
        %s125 = scalar_select %p124, %s15, 1
        %s126 = smul.addr %s125, 4
        %s127 = scalar_lea.vmem %s0, %s126
      $region20: #{color_cnn_plus_forward.3} parent=15 // pred_fallthru
        _
      // Predicated region
      $region21: #{color_cnn_plus_forward.3} parent=15 // pred_check
        %p128 = pneg %p68
      $region22: #{color_cnn_plus_forward.3} parent=15 // pred_check_branch
        %130 = sbr.rel (%p128) target = $region24
      $region23: #{color_cnn_plus_forward.3} parent=15 // pred_region
        %s131 = smul.u32 2, %s16
        %p132 = scmp.lt.s32.totalorder %s15, 1
        %s133 = scalar_select %p132, %s15, 1
        %p134 = scmp.lt.s32.totalorder %s131, 1
        %s135 = scalar_select %p134, %s131, 1
        %s136 = smul.addr %s133, 2
        %s137 = sadd.s32 %s135, %s136
        %s138 = smul.addr %s137, 8
        %s139 = scalar_lea.vmem %s1, %s138
        %s140 = smul.u32 2, %s16
      $region24: #{color_cnn_plus_forward.3} parent=15 // pred_fallthru
        _
    $region16: #{color_cnn_plus_forward.3} parent=5 // pred_fallthru
      _
    %p141 = scmp.le.s32.totalorder 1, %s8
    %p142 = scmp.lt.s32.totalorder %s8, 3
    %p143 = pnand %p141, %p142
    %p144 = pneg %p143
    // Predicated region
    $region25: #{color_cnn_plus_forward.3} parent=5 // pred_check
      _
    $region26: #{color_cnn_plus_forward.3} parent=5 // pred_check_branch
      %146 = sbr.rel (%p143) target = $region28
    $region27: #{color_cnn_plus_forward.3} parent=5 // pred_region
      %s147 = ssub.s32 %s8, 1
      %p148 = scmp.lt.s32.totalorder %s17, 1
      %s149 = scalar_select %p148, %s17, 1
      %s150 = smul.addr %s149, 4
      %s151 = scalar_lea.vmem %s0, %s150
      %p152 = pneg %p46
      %p153 = pneg %p43
      %s154 = smul.u32 2, %s18
      %p155 = scmp.lt.s32.totalorder %s17, 1
      %s156 = scalar_select %p155, %s17, 1
      %p157 = scmp.lt.s32.totalorder %s154, 1
      %s158 = scalar_select %p157, %s154, 1
      %s159 = smul.addr %s156, 2
      %s160 = sadd.s32 %s158, %s159
      %s161 = smul.addr %s160, 8
      %s162 = scalar_lea.vmem %s1, %s161
      %p163 = pneg %p74
      %p164 = pneg %p71
      %p165 = pneg %p102
      %p166 = pneg %p99
      %s167 = smul.u32 2, %s18
      %p168 = scmp.lt.s32.totalorder %s17, 1
      %s169 = scalar_select %p168, %s17, 1
      %p170 = scmp.lt.s32.totalorder %s167, 1
      %s171 = scalar_select %p170, %s167, 1
      %s172 = smul.addr %s169, 2
      %s173 = sadd.s32 %s171, %s172
      %s174 = smul.addr %s173, 4
      %s175 = scalar_lea.vmem %s2, %s174
      %p176 = scmp.lt.s32.totalorder %s17, 1
      %s177 = scalar_select %p176, %s17, 1
      %s178 = smul.addr %s177, 4
      %s179 = scalar_lea.vmem %s0, %s178
      %s180 = smul.u32 2, %s18
      %p181 = scmp.lt.s32.totalorder %s17, 1
      %s182 = scalar_select %p181, %s17, 1
      %p183 = scmp.lt.s32.totalorder %s180, 1
      %s184 = scalar_select %p183, %s180, 1
      %s185 = smul.addr %s182, 2
      %s186 = sadd.s32 %s184, %s185
      %s187 = smul.addr %s186, 8
      %s188 = scalar_lea.vmem %s1, %s187
      %s189 = smul.u32 2, %s18
      %s190 = smul.u32 2, %s18
      %p191 = scmp.lt.s32.totalorder %s17, 1
      %s192 = scalar_select %p191, %s17, 1
      %p193 = scmp.lt.s32.totalorder %s190, 1
      %s194 = scalar_select %p193, %s190, 1
      %s195 = smul.addr %s192, 2
      %s196 = sadd.s32 %s194, %s195
      %s197 = smul.addr %s196, 4
      %s198 = scalar_lea.vmem %s2, %s197
      %s199 = smul.u32 2, %s18
      %v200 = vld [vmem:[%s179] sm:$0x7]
      %v201 = vld [vmem:[%s188] sm:$0xff]
      %v202 = vld [vmem:[%s188 + $0x8] sm:$0xff]
      %vm203 = vcmask 64512
      %v205 = vsel %vm203, %v200, 0
      %207 = vmatpush.msra.mxu0 0.0
      %208 = vmatpush.msra.mxu0 0.0
      %209 = vmatpush.msra.mxu0 0.0
      %210 = vmatpush.msra.mxu0 0.0
      %211 = vmatpush.msra.mxu0 0.0
      %212 = vmatpush.msra.mxu0 0.0
      %213 = vmatpush.msra.mxu0 0.0
      %214 = vmatpush.msra.mxu0 0.0
      %215 = vmatpush.msra.mxu0 0.0
      %216 = vmatpush.msra.mxu0 0.0
      %217 = vmatpush.msra.mxu0 0.0
      %218 = vmatpush.msra.mxu0 0.0
      %219 = vmatpush.msra.mxu0 0.0
      %220 = vmatpush.msra.mxu0 0.0
      %221 = vmatpush.msra.mxu0 0.0
      %222 = vmatpush.msra.mxu0 %v201
      %223 = vmatmul.f32.gmra.mxu0 %v205
      %v224 = vpop.f32.mrf.mxu0
      %v225 = vadd.f32 0.0, %v224
      %226 = vdwg.mxu0
      %227 = vmatpush.msra.mxu0 0.0
      %228 = vmatpush.msra.mxu0 0.0
      %229 = vmatpush.msra.mxu0 0.0
      %230 = vmatpush.msra.mxu0 0.0
      %231 = vmatpush.msra.mxu0 0.0
      %232 = vmatpush.msra.mxu0 0.0
      %233 = vmatpush.msra.mxu0 0.0
      %234 = vmatpush.msra.mxu0 0.0
      %235 = vmatpush.msra.mxu0 0.0
      %236 = vmatpush.msra.mxu0 0.0
      %237 = vmatpush.msra.mxu0 0.0
      %238 = vmatpush.msra.mxu0 0.0
      %239 = vmatpush.msra.mxu0 0.0
      %240 = vmatpush.msra.mxu0 0.0
      %241 = vmatpush.msra.mxu0 0.0
      %242 = vmatpush.msra.mxu0 %v202
      %243 = vmatmul.f32.gmra.mxu0 %v205
      %v244 = vpop.f32.mrf.mxu0
      %v245 = vadd.f32 0.0, %v244
      %246 = vdwg.mxu0
      %v249 = vrot.slane %v245, 4
      %vm250 = vcmask 1043456
      %v251 = vsel %vm250, %v225, %v249
      %253 = vst [vmem:[%s198] sm:$0x77] %v251
      %s254 = smul.u32 2, %s18
      %p255 = scmp.lt.s32.totalorder %s17, 1
      %s256 = scalar_select %p255, %s17, 1
      %p257 = scmp.lt.s32.totalorder %s254, 1
      %s258 = scalar_select %p257, %s254, 1
      %s259 = smul.addr %s256, 2
      %s260 = sadd.s32 %s258, %s259
      %s261 = smul.addr %s260, 4
      %s262 = scalar_lea.vmem %s2, %s261
      // Predicated region
      $region29: #{color_cnn_plus_forward.3} parent=27 // pred_check
        %p263 = pneg %p99
      $region30: #{color_cnn_plus_forward.3} parent=27 // pred_check_branch
        %265 = sbr.rel (%p263) target = $region32
      $region31: #{color_cnn_plus_forward.3} parent=27 // pred_region
        %s266 = smul.u32 2, %s18
      $region32: #{color_cnn_plus_forward.3} parent=27 // pred_fallthru
        _
    $region28: #{color_cnn_plus_forward.3} parent=5 // pred_fallthru
      _
    %p267 = scmp.le.s32.totalorder 2, %s8
    // Predicated region
    $region33: #{color_cnn_plus_forward.3} parent=5 // pred_check
      %p268 = pneg %p267
    $region34: #{color_cnn_plus_forward.3} parent=5 // pred_check_branch
      %270 = sbr.rel (%p268) target = $region36
    $region35: #{color_cnn_plus_forward.3} parent=5 // pred_region
      %s271 = ssub.s32 %s8, 2
      // Predicated region
      $region37: #{color_cnn_plus_forward.3} parent=35 // pred_check
        %p272 = pneg %p105
      $region38: #{color_cnn_plus_forward.3} parent=35 // pred_check_branch
        %274 = sbr.rel (%p272) target = $region40
      $region39: #{color_cnn_plus_forward.3} parent=35 // pred_region
        %s275 = smul.u32 2, %s20
        %p276 = scmp.lt.s32.totalorder %s19, 1
        %s277 = scalar_select %p276, %s19, 1
        %p278 = scmp.lt.s32.totalorder %s275, 1
        %s279 = scalar_select %p278, %s275, 1
        %s280 = smul.addr %s277, 2
        %s281 = sadd.s32 %s279, %s280
        %s282 = smul.addr %s281, 4
        %s283 = scalar_lea.vmem %s2, %s282
      $region40: #{color_cnn_plus_forward.3} parent=35 // pred_fallthru
        _
    $region36: #{color_cnn_plus_forward.3} parent=5 // pred_fallthru
      _
  $region6: #{color_cnn_plus_forward.3} parent=0 // loop_footer
    %s12 = sadd.s32 1, %s8
  $region7: #{color_cnn_plus_forward.3} parent=0 // loop_footer_branch
    %7 = sbr.rel target = $region3
  $region8: #{color_cnn_plus_forward.3} parent=0 // loop_exit
    _

// kernel: color_cnn_plus_forward.2
$region0: #{color_cnn_plus_forward.2}
  #allocation0 [shape = 'u32[]', space=smem, size = 0x4, offset = 0x4, fixed_abs, tag = 'smem constant byte address 0x4 - core index']
  #allocation1 [shape = 'u32[72,128]{1,0:T(1,128)}', space=vmem, size = 0x9000, scoped, tag = 'internal scratch']
  #allocation2 [shape = 'f32[4,256]{1,0:T(4,128)}', space=vmem, size = 0x1000, scoped, tag = 'scratch operand']
  #allocation3 [shape = 'f32[4,8]{1,0:T(4,128)}', space=vmem, size = 0x800, scoped, tag = 'scratch operand']
  %s0 = inlined_call_operand.vmem [shape: f32[2,3,256], index: 0, kind: input, shape index: {}]
  %s1 = inlined_call_operand.vmem [shape: f32[256,4], index: 1, kind: input, shape index: {}]
  %s2 = inlined_call_operand.vmem [shape: f32[8,256], index: 2, kind: input, shape index: {}]
  %s3 = inlined_call_operand.vmem [shape: f32[2,8,256], index: 3, kind: output, shape index: {0}]
  %s4 = inlined_call_operand.vmem [shape: f32[2,3,8], index: 4, kind: output, shape index: {1}]
  %5 = xla_tuple %s3, %s4
  %s6 = sld [smem:[#allocation0]]
  $region61: #{color_cnn_plus_forward.2} parent=0
    _
  %s8 = ssub.s32 1, %s6
  %s9 = scalar_select 0, %s8, %s6
  loop: start=0, step=1, limit=4
  $region2: #{color_cnn_plus_forward.2} parent=0 // loop_pre_header
    _
  $region3: #{color_cnn_plus_forward.2} parent=0 // loop_header
    %s11 = sphi 0, %s15
    %p12 = scmp.ge.s32.totalorder %s11, 4
    %s18 = sphi 0, %s30
    %s19 = sphi 0, %s26
    %s20 = sphi 0, %s18
    %s21 = sphi 0, %s19
    %s22 = sphi 0, %s20
    %s23 = sphi 0, %s21
    %s35 = sphi 0, %s37
    %s38 = sphi 0, %s35
    %s39 = sphi 0, %s38
    %s55 = sphi 0, %s39
    %s59 = sphi 0, %s59
    %s61 = sphi 0, %s59
    %s62 = sphi 0, %s61
    %s76 = sphi 0, %s62
    %s80 = sphi 0, %s80
    %s82 = sphi 0, %s80
    %s83 = sphi 0, %s82
    %s97 = sphi 0, %s83
    %s105 = sphi 0, %s107
    %s108 = sphi 0, %s105
    %s109 = sphi 0, %s108
    %s125 = sphi 0, %s109
    %s131 = sphi 0, %s133
    %s134 = sphi 0, %s131
    %s135 = sphi 0, %s134
    %s151 = sphi 0, %s135
  $region4: #{color_cnn_plus_forward.2} parent=0 // loop_header_branch
    %14 = sbr.rel (%p12) target = $region8
  $region5: #{color_cnn_plus_forward.2} parent=0 // loop_body
    %s16 = ssub.s32 %s11, 1
    %s17 = ssub.s32 %s11, 2
    %s24 = sadd.s32 1, %s19
    %p25 = scmp.ge.s32.totalorder %s24, 1
    %s26 = scalar_select %p25, 0, %s24
    %s27 = sadd.s32 1, %s18
    %s28 = scalar_select %p25, %s27, %s18
    %p29 = scmp.ge.s32.totalorder %s28, 2
    %s30 = scalar_select %p29, 0, %s28
    %s31 = ssub.s32 %s18, %s30
    %s32 = ssub.s32 %s19, %s26
    %s33 = sor.u32 %s31, %s32
    %p34 = scmp.eq.s32.totalorder %s33, 0
    %s36 = sadd.s32 %s35, 1
    %s37 = scalar_select %p34, %s35, %s36
    %p40 = pneg %p34
    %p41 = scmp.eq.s32.totalorder %s11, 1
    %p42 = por %p40, %p41
    %p43 = scmp.ne.s32.totalorder %s35, %s38
    %p44 = scmp.eq.s32.totalorder %s11, 0
    %p45 = por %p43, %p44
    %p46 = scmp.ne.s32.totalorder %s35, %s38
    %p47 = scmp.eq.s32.totalorder %s16, 1
    %p48 = por %p46, %p47
    %p49 = scmp.ne.s32.totalorder %s38, %s39
    %p50 = scmp.eq.s32.totalorder %s16, 0
    %p51 = por %p49, %p50
    %p52 = scmp.ne.s32.totalorder %s38, %s39
    %p53 = scmp.eq.s32.totalorder %s17, 1
    %p54 = por %p52, %p53
    %p56 = scmp.ne.s32.totalorder %s39, %s55
    %p57 = scmp.eq.s32.totalorder %s17, 0
    %p58 = por %p56, %p57
    %s60 = sadd.s32 %s59, 1
    %p63 = scmp.eq.s32.totalorder %s11, 1
    %p64 = scmp.ne.s32.totalorder %s59, %s61
    %p65 = scmp.eq.s32.totalorder %s11, 0
    %p66 = por %p64, %p65
    %p67 = scmp.ne.s32.totalorder %s59, %s61
    %p68 = scmp.eq.s32.totalorder %s16, 1
    %p69 = por %p67, %p68
    %p70 = scmp.ne.s32.totalorder %s61, %s62
    %p71 = scmp.eq.s32.totalorder %s16, 0
    %p72 = por %p70, %p71
    %p73 = scmp.ne.s32.totalorder %s61, %s62
    %p74 = scmp.eq.s32.totalorder %s17, 1
    %p75 = por %p73, %p74
    %p77 = scmp.ne.s32.totalorder %s62, %s76
    %p78 = scmp.eq.s32.totalorder %s17, 0
    %p79 = por %p77, %p78
    %s81 = sadd.s32 %s80, 1
    %p84 = scmp.eq.s32.totalorder %s11, 1
    %p85 = scmp.ne.s32.totalorder %s80, %s82
    %p86 = scmp.eq.s32.totalorder %s11, 0
    %p87 = por %p85, %p86
    %p88 = scmp.ne.s32.totalorder %s80, %s82
    %p89 = scmp.eq.s32.totalorder %s16, 1
    %p90 = por %p88, %p89
    %p91 = scmp.ne.s32.totalorder %s82, %s83
    %p92 = scmp.eq.s32.totalorder %s16, 0
    %p93 = por %p91, %p92
    %p94 = scmp.ne.s32.totalorder %s82, %s83
    %p95 = scmp.eq.s32.totalorder %s17, 1
    %p96 = por %p94, %p95
    %p98 = scmp.ne.s32.totalorder %s83, %s97
    %p99 = scmp.eq.s32.totalorder %s17, 0
    %p100 = por %p98, %p99
    %s101 = ssub.s32 %s18, %s30
    %s102 = ssub.s32 %s19, %s26
    %s103 = sor.u32 %s101, %s102
    %p104 = scmp.eq.s32.totalorder %s103, 0
    %s106 = sadd.s32 %s105, 1
    %s107 = scalar_select %p104, %s105, %s106
    %p110 = pneg %p104
    %p111 = scmp.eq.s32.totalorder %s11, 1
    %p112 = por %p110, %p111
    %p113 = scmp.ne.s32.totalorder %s105, %s108
    %p114 = scmp.eq.s32.totalorder %s11, 0
    %p115 = por %p113, %p114
    %p116 = scmp.ne.s32.totalorder %s105, %s108
    %p117 = scmp.eq.s32.totalorder %s16, 1
    %p118 = por %p116, %p117
    %p119 = scmp.ne.s32.totalorder %s108, %s109
    %p120 = scmp.eq.s32.totalorder %s16, 0
    %p121 = por %p119, %p120
    %p122 = scmp.ne.s32.totalorder %s108, %s109
    %p123 = scmp.eq.s32.totalorder %s17, 1
    %p124 = por %p122, %p123
    %p126 = scmp.ne.s32.totalorder %s109, %s125
    %p127 = scmp.eq.s32.totalorder %s17, 0
    %p128 = por %p126, %p127
    %s129 = ssub.s32 %s18, %s30
    %p130 = scmp.eq.s32.totalorder %s129, 0
    %s132 = sadd.s32 %s131, 1
    %s133 = scalar_select %p130, %s131, %s132
    %p136 = pneg %p130
    %p137 = scmp.eq.s32.totalorder %s11, 1
    %p138 = por %p136, %p137
    %p139 = scmp.ne.s32.totalorder %s131, %s134
    %p140 = scmp.eq.s32.totalorder %s11, 0
    %p141 = por %p139, %p140
    %p142 = scmp.ne.s32.totalorder %s131, %s134
    %p143 = scmp.eq.s32.totalorder %s16, 1
    %p144 = por %p142, %p143
    %p145 = scmp.ne.s32.totalorder %s134, %s135
    %p146 = scmp.eq.s32.totalorder %s16, 0
    %p147 = por %p145, %p146
    %p148 = scmp.ne.s32.totalorder %s134, %s135
    %p149 = scmp.eq.s32.totalorder %s17, 1
    %p150 = por %p148, %p149
    %p152 = scmp.ne.s32.totalorder %s135, %s151
    %p153 = scmp.eq.s32.totalorder %s17, 0
    %p154 = por %p152, %p153
    %p155 = scmp.le.s32.totalorder 1, %s11
    %p156 = scmp.lt.s32.totalorder %s11, 3
    %p157 = pnand %p155, %p156
    %p158 = pneg %p157
    // Predicated region
    $region9: #{color_cnn_plus_forward.2} parent=5 // pred_check
      _
    $region10: #{color_cnn_plus_forward.2} parent=5 // pred_check_branch
      %160 = sbr.rel (%p157) target = $region12
    $region11: #{color_cnn_plus_forward.2} parent=5 // pred_region
      %s161 = ssub.s32 %s11, 1
      // Predicated region
      $region13: #{color_cnn_plus_forward.2} parent=11 // pred_check
        %p162 = pneg %p72
      $region14: #{color_cnn_plus_forward.2} parent=11 // pred_check_branch
        %164 = sbr.rel (%p162) target = $region16
      $region15: #{color_cnn_plus_forward.2} parent=11 // pred_region
        _
      $region16: #{color_cnn_plus_forward.2} parent=11 // pred_fallthru
        _
      // Predicated region
      $region17: #{color_cnn_plus_forward.2} parent=11 // pred_check
        %p165 = pneg %p93
      $region18: #{color_cnn_plus_forward.2} parent=11 // pred_check_branch
        %167 = sbr.rel (%p165) target = $region20
      $region19: #{color_cnn_plus_forward.2} parent=11 // pred_region
        _
      $region20: #{color_cnn_plus_forward.2} parent=11 // pred_fallthru
        _
    $region12: #{color_cnn_plus_forward.2} parent=5 // pred_fallthru
      _
    %p168 = scmp.lt.s32.totalorder %s11, 2
    // Predicated region
    $region21: #{color_cnn_plus_forward.2} parent=5 // pred_check
      %p169 = pneg %p168
    $region22: #{color_cnn_plus_forward.2} parent=5 // pred_check_branch
      %171 = sbr.rel (%p169) target = $region24
    $region23: #{color_cnn_plus_forward.2} parent=5 // pred_region
      // Predicated region
      $region25: #{color_cnn_plus_forward.2} parent=23 // pred_check
        %p172 = pneg %p45
      $region26: #{color_cnn_plus_forward.2} parent=23 // pred_check_branch
        %174 = sbr.rel (%p172) target = $region28
      $region27: #{color_cnn_plus_forward.2} parent=23 // pred_region
        %s175 = smul.u32 2, %s19
        %p176 = scmp.lt.s32.totalorder %s18, 1
        %s177 = scalar_select %p176, %s18, 1
        %p178 = scmp.lt.s32.totalorder %s175, 1
        %s179 = scalar_select %p178, %s175, 1
        %s180 = smul.addr %s177, 2
        %s181 = sadd.s32 %s179, %s180
        %s182 = smul.addr %s181, 4
        %s183 = scalar_lea.vmem %s0, %s182
        %s184 = smul.u32 2, %s19
      $region28: #{color_cnn_plus_forward.2} parent=23 // pred_fallthru
        _
    $region24: #{color_cnn_plus_forward.2} parent=5 // pred_fallthru
      _
    %p185 = scmp.le.s32.totalorder 1, %s11
    %p186 = scmp.lt.s32.totalorder %s11, 3
    %p187 = pnand %p185, %p186
    %p188 = pneg %p187
    // Predicated region
    $region29: #{color_cnn_plus_forward.2} parent=5 // pred_check
      _
    $region30: #{color_cnn_plus_forward.2} parent=5 // pred_check_branch
      %190 = sbr.rel (%p187) target = $region32
    $region31: #{color_cnn_plus_forward.2} parent=5 // pred_region
      %s191 = ssub.s32 %s11, 1
      %s192 = smul.u32 2, %s21
      %p193 = scmp.lt.s32.totalorder %s20, 1
      %s194 = scalar_select %p193, %s20, 1
      %p195 = scmp.lt.s32.totalorder %s192, 1
      %s196 = scalar_select %p195, %s192, 1
      %s197 = smul.addr %s194, 2
      %s198 = sadd.s32 %s196, %s197
      %s199 = smul.addr %s198, 4
      %s200 = scalar_lea.vmem %s0, %s199
      %p201 = pneg %p51
      %p202 = pneg %p48
      %p203 = pneg %p72
      %p204 = pneg %p69
      %p205 = pneg %p93
      %p206 = pneg %p90
      %p207 = pneg %p121
      %p208 = pneg %p118
      %s209 = smul.u32 2, %s21
      %p210 = scmp.lt.s32.totalorder %s20, 1
      %s211 = scalar_select %p210, %s20, 1
      %p212 = scmp.lt.s32.totalorder %s209, 1
      %s213 = scalar_select %p212, %s209, 1
      %s214 = smul.addr %s211, 2
      %s215 = sadd.s32 %s213, %s214
      %s216 = smul.addr %s215, 8
      %s217 = scalar_lea.vmem %s3, %s216
      %p218 = pneg %p147
      %p219 = pneg %p144
      %p220 = scmp.lt.s32.totalorder %s20, 1
      %s221 = scalar_select %p220, %s20, 1
      %s222 = smul.addr %s221, 4
      %s223 = scalar_lea.vmem %s4, %s222
      %s224 = smul.u32 2, %s21
      %p225 = scmp.lt.s32.totalorder %s20, 1
      %s226 = scalar_select %p225, %s20, 1
      %p227 = scmp.lt.s32.totalorder %s224, 1
      %s228 = scalar_select %p227, %s224, 1
      %s229 = smul.addr %s226, 2
      %s230 = sadd.s32 %s228, %s229
      %s231 = smul.addr %s230, 4
      %s232 = scalar_lea.vmem %s0, %s231
      %s233 = smul.u32 2, %s21
      %s234 = smul.u32 2, %s21
      %p235 = scmp.lt.s32.totalorder %s20, 1
      %s236 = scalar_select %p235, %s20, 1
      %p237 = scmp.lt.s32.totalorder %s234, 1
      %s238 = scalar_select %p237, %s234, 1
      %s239 = smul.addr %s236, 2
      %s240 = sadd.s32 %s238, %s239
      %s241 = smul.addr %s240, 8
      %s242 = scalar_lea.vmem %s3, %s241
      %s243 = smul.u32 2, %s21
      %p244 = scmp.lt.s32.totalorder %s20, 1
      %s245 = scalar_select %p244, %s20, 1
      %s246 = smul.addr %s245, 4
      %s247 = scalar_lea.vmem %s4, %s246
      %v248 = vld [vmem:[%s232] sm:$0x77]
      %249 = vst [vmem:[#allocation2] sm:$0x77] %v248
      %v250 = vlaneseq
      %vm251 = vcmp.ge.s32.totalorder %v250, 0
      %vm252 = vcmp.lt.s32.totalorder %v250, 256
      %vm253 = vmand %vm251, %vm252
      %s254 = scalar_lea.vmem [#allocation2], 3
      %255 = vst.msk [vmem:[%s254] ss:$4 sm:$0x3] %vm253, 1.0
      %v256 = vld [vmem:[#allocation2] sm:$0xff]
      %v257 = vld [vmem:[%s1] sm:$0xff]
      %v258 = vld [vmem:[%s1 + $0x8] sm:$0xff]
      %v259 = vld [vmem:[%s1 + $0x10] sm:$0xff]
      %v260 = vld [vmem:[%s1 + $0x18] sm:$0xff]
      %v261 = vld [vmem:[%s1 + $0x20] sm:$0xff]
      %v262 = vld [vmem:[%s1 + $0x28] sm:$0xff]
      %v263 = vld [vmem:[%s1 + $0x30] sm:$0xff]
      %v264 = vld [vmem:[%s1 + $0x38] sm:$0xff]
      %v265 = vld [vmem:[%s1 + $0x40] sm:$0xff]
      %v266 = vld [vmem:[%s1 + $0x48] sm:$0xff]
      %v267 = vld [vmem:[%s1 + $0x50] sm:$0xff]
      %v268 = vld [vmem:[%s1 + $0x58] sm:$0xff]
      %v269 = vld [vmem:[%s1 + $0x60] sm:$0xff]
      %v270 = vld [vmem:[%s1 + $0x68] sm:$0xff]
      %v271 = vld [vmem:[%s1 + $0x70] sm:$0xff]
      %v272 = vld [vmem:[%s1 + $0x78] sm:$0xff]
      %v273 = vld [vmem:[%s1 + $0x80] sm:$0xff]
      %v274 = vld [vmem:[%s1 + $0x88] sm:$0xff]
      %v275 = vld [vmem:[%s1 + $0x90] sm:$0xff]
      %v276 = vld [vmem:[%s1 + $0x98] sm:$0xff]
      %v277 = vld [vmem:[%s1 + $0xa0] sm:$0xff]
      %v278 = vld [vmem:[%s1 + $0xa8] sm:$0xff]
      %v279 = vld [vmem:[%s1 + $0xb0] sm:$0xff]
      %v280 = vld [vmem:[%s1 + $0xb8] sm:$0xff]
      %v281 = vld [vmem:[%s1 + $0xc0] sm:$0xff]
      %v282 = vld [vmem:[%s1 + $0xc8] sm:$0xff]
      %v283 = vld [vmem:[%s1 + $0xd0] sm:$0xff]
      %v284 = vld [vmem:[%s1 + $0xd8] sm:$0xff]
      %v285 = vld [vmem:[%s1 + $0xe0] sm:$0xff]
      %v286 = vld [vmem:[%s1 + $0xe8] sm:$0xff]
      %v287 = vld [vmem:[%s1 + $0xf0] sm:$0xff]
      %v288 = vld [vmem:[%s1 + $0xf8] sm:$0xff]
      %290 = vst [vmem:[#allocation1] ss:$2 sm:$0xff] %v256
      %v291 = vld.sshfl [vmem:[#allocation1] sm:$0xff pattern:$0x75316420]
      %v292 = vld.sshfl [vmem:[#allocation1 + $0x8] sm:$0xff pattern:$0x75316420]
      %vm293 = vcmask 31744
      %v295 = vsel %vm293, %v257, 0
      %v298 = vsel %vm293, %v258, 0
      %v301 = vsel %vm293, %v259, 0
      %v304 = vsel %vm293, %v260, 0
      %v307 = vsel %vm293, %v261, 0
      %v310 = vsel %vm293, %v262, 0
      %v313 = vsel %vm293, %v263, 0
      %v316 = vsel %vm293, %v264, 0
      %v319 = vsel %vm293, %v265, 0
      %v322 = vsel %vm293, %v266, 0
      %v325 = vsel %vm293, %v267, 0
      %v328 = vsel %vm293, %v268, 0
      %v331 = vsel %vm293, %v269, 0
      %v334 = vsel %vm293, %v270, 0
      %v337 = vsel %vm293, %v271, 0
      %v340 = vsel %vm293, %v272, 0
      %v343 = vsel %vm293, %v273, 0
      %v346 = vsel %vm293, %v274, 0
      %v349 = vsel %vm293, %v275, 0
      %v352 = vsel %vm293, %v276, 0
      %v355 = vsel %vm293, %v277, 0
      %v358 = vsel %vm293, %v278, 0
      %v361 = vsel %vm293, %v279, 0
      %v364 = vsel %vm293, %v280, 0
      %v367 = vsel %vm293, %v281, 0
      %v370 = vsel %vm293, %v282, 0
      %v373 = vsel %vm293, %v283, 0
      %v376 = vsel %vm293, %v284, 0
      %v379 = vsel %vm293, %v285, 0
      %v382 = vsel %vm293, %v286, 0
      %v385 = vsel %vm293, %v287, 0
      %v388 = vsel %vm293, %v288, 0
      %vm390 = vcmask 1043456
      %v391 = vsel %vm390, %v291, 0
      %v393 = vsel %vm390, %v292, 0
      %395 = vmatpush.msra.mxu0 0.0
      %396 = vmatpush.msra.mxu0 0.0
      %397 = vmatpush.msra.mxu0 0.0
      %398 = vmatpush.msra.mxu0 0.0
      %399 = vmatpush.msra.mxu0 0.0
      %400 = vmatpush.msra.mxu0 0.0
      %401 = vmatpush.msra.mxu0 0.0
      %402 = vmatpush.msra.mxu0 0.0
      %403 = vmatpush.msra.mxu0 0.0
      %404 = vmatpush.msra.mxu0 0.0
      %405 = vmatpush.msra.mxu0 0.0
      %406 = vmatpush.msra.mxu0 0.0
      %407 = vmatpush.msra.mxu0 0.0
      %408 = vmatpush.msra.mxu0 0.0
      %409 = vmatpush.msra.mxu0 0.0
      %410 = vmatpush.msra.mxu0 %v391
      %411 = vmatmul.f32.gmra.mxu0 %v295
      %v412 = vpop.f32.mrf.mxu0
      %v413 = vadd.f32 0.0, %v412
      %414 = vmatmul.f32.gmra.mxu0 %v298
      %v415 = vpop.f32.mrf.mxu0
      %v416 = vadd.f32 0.0, %v415
      %417 = vmatmul.f32.gmra.mxu0 %v301
      %v418 = vpop.f32.mrf.mxu0
      %v419 = vadd.f32 0.0, %v418
      %420 = vmatmul.f32.gmra.mxu0 %v304
      %v421 = vpop.f32.mrf.mxu0
      %v422 = vadd.f32 0.0, %v421
      %423 = vmatmul.f32.gmra.mxu0 %v307
      %v424 = vpop.f32.mrf.mxu0
      %v425 = vadd.f32 0.0, %v424
      %426 = vmatmul.f32.gmra.mxu0 %v310
      %v427 = vpop.f32.mrf.mxu0
      %v428 = vadd.f32 0.0, %v427
      %429 = vmatmul.f32.gmra.mxu0 %v313
      %v430 = vpop.f32.mrf.mxu0
      %v431 = vadd.f32 0.0, %v430
      %432 = vmatmul.f32.gmra.mxu0 %v316
      %v433 = vpop.f32.mrf.mxu0
      %v434 = vadd.f32 0.0, %v433
      %435 = vmatmul.f32.gmra.mxu0 %v319
      %v436 = vpop.f32.mrf.mxu0
      %v437 = vadd.f32 0.0, %v436
      %438 = vmatmul.f32.gmra.mxu0 %v322
      %v439 = vpop.f32.mrf.mxu0
      %v440 = vadd.f32 0.0, %v439
      %441 = vmatmul.f32.gmra.mxu0 %v325
      %v442 = vpop.f32.mrf.mxu0
      %v443 = vadd.f32 0.0, %v442
      %444 = vmatmul.f32.gmra.mxu0 %v328
      %v445 = vpop.f32.mrf.mxu0
      %v446 = vadd.f32 0.0, %v445
      %447 = vmatmul.f32.gmra.mxu0 %v331
      %v448 = vpop.f32.mrf.mxu0
      %v449 = vadd.f32 0.0, %v448
      %450 = vmatmul.f32.gmra.mxu0 %v334
      %v451 = vpop.f32.mrf.mxu0
      %v452 = vadd.f32 0.0, %v451
      %453 = vmatmul.f32.gmra.mxu0 %v337
      %v454 = vpop.f32.mrf.mxu0
      %v455 = vadd.f32 0.0, %v454
      %456 = vmatmul.f32.gmra.mxu0 %v340
      %v457 = vpop.f32.mrf.mxu0
      %v458 = vadd.f32 0.0, %v457
      %459 = vmatmul.f32.gmra.mxu0 %v343
      %v460 = vpop.f32.mrf.mxu0
      %v461 = vadd.f32 0.0, %v460
      %462 = vmatmul.f32.gmra.mxu0 %v346
      %v463 = vpop.f32.mrf.mxu0
      %v464 = vadd.f32 0.0, %v463
      %465 = vmatmul.f32.gmra.mxu0 %v349
      %v466 = vpop.f32.mrf.mxu0
      %v467 = vadd.f32 0.0, %v466
      %468 = vmatmul.f32.gmra.mxu0 %v352
      %v469 = vpop.f32.mrf.mxu0
      %v470 = vadd.f32 0.0, %v469
      %471 = vmatmul.f32.gmra.mxu0 %v355
      %v472 = vpop.f32.mrf.mxu0
      %v473 = vadd.f32 0.0, %v472
      %474 = vmatmul.f32.gmra.mxu0 %v358
      %v475 = vpop.f32.mrf.mxu0
      %v476 = vadd.f32 0.0, %v475
      %477 = vmatmul.f32.gmra.mxu0 %v361
      %v478 = vpop.f32.mrf.mxu0
      %v479 = vadd.f32 0.0, %v478
      %480 = vmatmul.f32.gmra.mxu0 %v364
      %v481 = vpop.f32.mrf.mxu0
      %v482 = vadd.f32 0.0, %v481
      %483 = vmatmul.f32.gmra.mxu0 %v367
      %v484 = vpop.f32.mrf.mxu0
      %v485 = vadd.f32 0.0, %v484
      %486 = vmatmul.f32.gmra.mxu0 %v370
      %v487 = vpop.f32.mrf.mxu0
      %v488 = vadd.f32 0.0, %v487
      %489 = vmatmul.f32.gmra.mxu0 %v373
      %v490 = vpop.f32.mrf.mxu0
      %v491 = vadd.f32 0.0, %v490
      %492 = vmatmul.f32.gmra.mxu0 %v376
      %v493 = vpop.f32.mrf.mxu0
      %v494 = vadd.f32 0.0, %v493
      %495 = vmatmul.f32.gmra.mxu0 %v379
      %v496 = vpop.f32.mrf.mxu0
      %v497 = vadd.f32 0.0, %v496
      %498 = vmatmul.f32.gmra.mxu0 %v382
      %v499 = vpop.f32.mrf.mxu0
      %v500 = vadd.f32 0.0, %v499
      %501 = vmatmul.f32.gmra.mxu0 %v385
      %v502 = vpop.f32.mrf.mxu0
      %v503 = vadd.f32 0.0, %v502
      %504 = vmatmul.f32.gmra.mxu0 %v388
      %v505 = vpop.f32.mrf.mxu0
      %v506 = vadd.f32 0.0, %v505
      %507 = vdwg.mxu0
      %508 = vmatpush.msra.mxu0 0.0
      %509 = vmatpush.msra.mxu0 0.0
      %510 = vmatpush.msra.mxu0 0.0
      %511 = vmatpush.msra.mxu0 0.0
      %512 = vmatpush.msra.mxu0 0.0
      %513 = vmatpush.msra.mxu0 0.0
      %514 = vmatpush.msra.mxu0 0.0
      %515 = vmatpush.msra.mxu0 0.0
      %516 = vmatpush.msra.mxu0 0.0
      %517 = vmatpush.msra.mxu0 0.0
      %518 = vmatpush.msra.mxu0 0.0
      %519 = vmatpush.msra.mxu0 0.0
      %520 = vmatpush.msra.mxu0 0.0
      %521 = vmatpush.msra.mxu0 0.0
      %522 = vmatpush.msra.mxu0 0.0
      %523 = vmatpush.msra.mxu0 %v393
      %524 = vmatmul.f32.gmra.mxu0 %v295
      %v525 = vpop.f32.mrf.mxu0
      %v526 = vadd.f32 0.0, %v525
      %527 = vmatmul.f32.gmra.mxu0 %v298
      %v528 = vpop.f32.mrf.mxu0
      %v529 = vadd.f32 0.0, %v528
      %530 = vmatmul.f32.gmra.mxu0 %v301
      %v531 = vpop.f32.mrf.mxu0
      %v532 = vadd.f32 0.0, %v531
      %533 = vmatmul.f32.gmra.mxu0 %v304
      %v534 = vpop.f32.mrf.mxu0
      %v535 = vadd.f32 0.0, %v534
      %536 = vmatmul.f32.gmra.mxu0 %v307
      %v537 = vpop.f32.mrf.mxu0
      %v538 = vadd.f32 0.0, %v537
      %539 = vmatmul.f32.gmra.mxu0 %v310
      %v540 = vpop.f32.mrf.mxu0
      %v541 = vadd.f32 0.0, %v540
      %542 = vmatmul.f32.gmra.mxu0 %v313
      %v543 = vpop.f32.mrf.mxu0
      %v544 = vadd.f32 0.0, %v543
      %545 = vmatmul.f32.gmra.mxu0 %v316
      %v546 = vpop.f32.mrf.mxu0
      %v547 = vadd.f32 0.0, %v546
      %548 = vmatmul.f32.gmra.mxu0 %v319
      %v549 = vpop.f32.mrf.mxu0
      %v550 = vadd.f32 0.0, %v549
      %551 = vmatmul.f32.gmra.mxu0 %v322
      %v552 = vpop.f32.mrf.mxu0
      %v553 = vadd.f32 0.0, %v552
      %554 = vmatmul.f32.gmra.mxu0 %v325
      %v555 = vpop.f32.mrf.mxu0
      %v556 = vadd.f32 0.0, %v555
      %557 = vmatmul.f32.gmra.mxu0 %v328
      %v558 = vpop.f32.mrf.mxu0
      %v559 = vadd.f32 0.0, %v558
      %560 = vmatmul.f32.gmra.mxu0 %v331
      %v561 = vpop.f32.mrf.mxu0
      %v562 = vadd.f32 0.0, %v561
      %563 = vmatmul.f32.gmra.mxu0 %v334
      %v564 = vpop.f32.mrf.mxu0
      %v565 = vadd.f32 0.0, %v564
      %566 = vmatmul.f32.gmra.mxu0 %v337
      %v567 = vpop.f32.mrf.mxu0
      %v568 = vadd.f32 0.0, %v567
      %569 = vmatmul.f32.gmra.mxu0 %v340
      %v570 = vpop.f32.mrf.mxu0
      %v571 = vadd.f32 0.0, %v570
      %572 = vmatmul.f32.gmra.mxu0 %v343
      %v573 = vpop.f32.mrf.mxu0
      %v574 = vadd.f32 0.0, %v573
      %575 = vmatmul.f32.gmra.mxu0 %v346
      %v576 = vpop.f32.mrf.mxu0
      %v577 = vadd.f32 0.0, %v576
      %578 = vmatmul.f32.gmra.mxu0 %v349
      %v579 = vpop.f32.mrf.mxu0
      %v580 = vadd.f32 0.0, %v579
      %581 = vmatmul.f32.gmra.mxu0 %v352
      %v582 = vpop.f32.mrf.mxu0
      %v583 = vadd.f32 0.0, %v582
      %584 = vmatmul.f32.gmra.mxu0 %v355
      %v585 = vpop.f32.mrf.mxu0
      %v586 = vadd.f32 0.0, %v585
      %587 = vmatmul.f32.gmra.mxu0 %v358
      %v588 = vpop.f32.mrf.mxu0
      %v589 = vadd.f32 0.0, %v588
      %590 = vmatmul.f32.gmra.mxu0 %v361
      %v591 = vpop.f32.mrf.mxu0
      %v592 = vadd.f32 0.0, %v591
      %593 = vmatmul.f32.gmra.mxu0 %v364
      %v594 = vpop.f32.mrf.mxu0
      %v595 = vadd.f32 0.0, %v594
      %596 = vmatmul.f32.gmra.mxu0 %v367
      %v597 = vpop.f32.mrf.mxu0
      %v598 = vadd.f32 0.0, %v597
      %599 = vmatmul.f32.gmra.mxu0 %v370
      %v600 = vpop.f32.mrf.mxu0
      %v601 = vadd.f32 0.0, %v600
      %602 = vmatmul.f32.gmra.mxu0 %v373
      %v603 = vpop.f32.mrf.mxu0
      %v604 = vadd.f32 0.0, %v603
      %605 = vmatmul.f32.gmra.mxu0 %v376
      %v606 = vpop.f32.mrf.mxu0
      %v607 = vadd.f32 0.0, %v606
      %608 = vmatmul.f32.gmra.mxu0 %v379
      %v609 = vpop.f32.mrf.mxu0
      %v610 = vadd.f32 0.0, %v609
      %611 = vmatmul.f32.gmra.mxu0 %v382
      %v612 = vpop.f32.mrf.mxu0
      %v613 = vadd.f32 0.0, %v612
      %614 = vmatmul.f32.gmra.mxu0 %v385
      %v615 = vpop.f32.mrf.mxu0
      %v616 = vadd.f32 0.0, %v615
      %617 = vmatmul.f32.gmra.mxu0 %v388
      %v618 = vpop.f32.mrf.mxu0
      %v619 = vadd.f32 0.0, %v618
      %620 = vdwg.mxu0
      %v621 = vmax.f32 %v413, 0.0
      %v622 = vmax.f32 %v526, 0.0
      %v623 = vmax.f32 %v416, 0.0
      %v624 = vmax.f32 %v529, 0.0
      %v625 = vmax.f32 %v419, 0.0
      %v626 = vmax.f32 %v532, 0.0
      %v627 = vmax.f32 %v422, 0.0
      %v628 = vmax.f32 %v535, 0.0
      %v629 = vmax.f32 %v425, 0.0
      %v630 = vmax.f32 %v538, 0.0
      %v631 = vmax.f32 %v428, 0.0
      %v632 = vmax.f32 %v541, 0.0
      %v633 = vmax.f32 %v431, 0.0
      %v634 = vmax.f32 %v544, 0.0
      %v635 = vmax.f32 %v434, 0.0
      %v636 = vmax.f32 %v547, 0.0
      %v637 = vmax.f32 %v437, 0.0
      %v638 = vmax.f32 %v550, 0.0
      %v639 = vmax.f32 %v440, 0.0
      %v640 = vmax.f32 %v553, 0.0
      %v641 = vmax.f32 %v443, 0.0
      %v642 = vmax.f32 %v556, 0.0
      %v643 = vmax.f32 %v446, 0.0
      %v644 = vmax.f32 %v559, 0.0
      %v645 = vmax.f32 %v449, 0.0
      %v646 = vmax.f32 %v562, 0.0
      %v647 = vmax.f32 %v452, 0.0
      %v648 = vmax.f32 %v565, 0.0
      %v649 = vmax.f32 %v455, 0.0
      %v650 = vmax.f32 %v568, 0.0
      %v651 = vmax.f32 %v458, 0.0
      %v652 = vmax.f32 %v571, 0.0
      %v653 = vmax.f32 %v461, 0.0
      %v654 = vmax.f32 %v574, 0.0
      %v655 = vmax.f32 %v464, 0.0
      %v656 = vmax.f32 %v577, 0.0
      %v657 = vmax.f32 %v467, 0.0
      %v658 = vmax.f32 %v580, 0.0
      %v659 = vmax.f32 %v470, 0.0
      %v660 = vmax.f32 %v583, 0.0
      %v661 = vmax.f32 %v473, 0.0
      %v662 = vmax.f32 %v586, 0.0
      %v663 = vmax.f32 %v476, 0.0
      %v664 = vmax.f32 %v589, 0.0
      %v665 = vmax.f32 %v479, 0.0
      %v666 = vmax.f32 %v592, 0.0
      %v667 = vmax.f32 %v482, 0.0
      %v668 = vmax.f32 %v595, 0.0
      %v669 = vmax.f32 %v485, 0.0
      %v670 = vmax.f32 %v598, 0.0
      %v671 = vmax.f32 %v488, 0.0
      %v672 = vmax.f32 %v601, 0.0
      %v673 = vmax.f32 %v491, 0.0
      %v674 = vmax.f32 %v604, 0.0
      %v675 = vmax.f32 %v494, 0.0
      %v676 = vmax.f32 %v607, 0.0
      %v677 = vmax.f32 %v497, 0.0
      %v678 = vmax.f32 %v610, 0.0
      %v679 = vmax.f32 %v500, 0.0
      %v680 = vmax.f32 %v613, 0.0
      %v681 = vmax.f32 %v503, 0.0
      %v682 = vmax.f32 %v616, 0.0
      %v683 = vmax.f32 %v506, 0.0
      %v684 = vmax.f32 %v619, 0.0
      %v685 = vld [vmem:[%s2] sm:$0xff]
      %v686 = vld [vmem:[%s2 + $0x8] sm:$0xff]
      %687 = vmatpush.msra.mxu0 %v651
      %688 = vmatpush.msra.mxu0 %v649
      %689 = vmatpush.msra.mxu0 %v647
      %690 = vmatpush.msra.mxu0 %v645
      %691 = vmatpush.msra.mxu0 %v643
      %692 = vmatpush.msra.mxu0 %v641
      %693 = vmatpush.msra.mxu0 %v639
      %694 = vmatpush.msra.mxu0 %v637
      %695 = vmatpush.msra.mxu0 %v635
      %696 = vmatpush.msra.mxu0 %v633
      %697 = vmatpush.msra.mxu0 %v631
      %698 = vmatpush.msra.mxu0 %v629
      %699 = vmatpush.msra.mxu0 %v627
      %700 = vmatpush.msra.mxu0 %v625
      %701 = vmatpush.msra.mxu0 %v623
      %702 = vmatpush.msra.mxu0 %v621
      %703 = vmatmul.f32.gmra.mxu0 %v685
      %v704 = vpop.f32.mrf.mxu0
      %v705 = vadd.f32 0.0, %v704
      %706 = vdwg.mxu0
      %707 = vmatpush.msra.mxu0 %v683
      %708 = vmatpush.msra.mxu0 %v681
      %709 = vmatpush.msra.mxu0 %v679
      %710 = vmatpush.msra.mxu0 %v677
      %711 = vmatpush.msra.mxu0 %v675
      %712 = vmatpush.msra.mxu0 %v673
      %713 = vmatpush.msra.mxu0 %v671
      %714 = vmatpush.msra.mxu0 %v669
      %715 = vmatpush.msra.mxu0 %v667
      %716 = vmatpush.msra.mxu0 %v665
      %717 = vmatpush.msra.mxu0 %v663
      %718 = vmatpush.msra.mxu0 %v661
      %719 = vmatpush.msra.mxu0 %v659
      %720 = vmatpush.msra.mxu0 %v657
      %721 = vmatpush.msra.mxu0 %v655
      %722 = vmatpush.msra.mxu0 %v653
      %723 = vmatmul.f32.gmra.mxu0 %v686
      %v724 = vpop.f32.mrf.mxu0
      %v725 = vadd.f32 %v705, %v724
      %726 = vdwg.mxu0
      %727 = vmatpush.msra.mxu0 %v652
      %728 = vmatpush.msra.mxu0 %v650
      %729 = vmatpush.msra.mxu0 %v648
      %730 = vmatpush.msra.mxu0 %v646
      %731 = vmatpush.msra.mxu0 %v644
      %732 = vmatpush.msra.mxu0 %v642
      %733 = vmatpush.msra.mxu0 %v640
      %734 = vmatpush.msra.mxu0 %v638
      %735 = vmatpush.msra.mxu0 %v636
      %736 = vmatpush.msra.mxu0 %v634
      %737 = vmatpush.msra.mxu0 %v632
      %738 = vmatpush.msra.mxu0 %v630
      %739 = vmatpush.msra.mxu0 %v628
      %740 = vmatpush.msra.mxu0 %v626
      %741 = vmatpush.msra.mxu0 %v624
      %742 = vmatpush.msra.mxu0 %v622
      %743 = vmatmul.f32.gmra.mxu0 %v685
      %v744 = vpop.f32.mrf.mxu0
      %v745 = vadd.f32 0.0, %v744
      %746 = vdwg.mxu0
      %747 = vmatpush.msra.mxu0 %v684
      %748 = vmatpush.msra.mxu0 %v682
      %749 = vmatpush.msra.mxu0 %v680
      %750 = vmatpush.msra.mxu0 %v678
      %751 = vmatpush.msra.mxu0 %v676
      %752 = vmatpush.msra.mxu0 %v674
      %753 = vmatpush.msra.mxu0 %v672
      %754 = vmatpush.msra.mxu0 %v670
      %755 = vmatpush.msra.mxu0 %v668
      %756 = vmatpush.msra.mxu0 %v666
      %757 = vmatpush.msra.mxu0 %v664
      %758 = vmatpush.msra.mxu0 %v662
      %759 = vmatpush.msra.mxu0 %v660
      %760 = vmatpush.msra.mxu0 %v658
      %761 = vmatpush.msra.mxu0 %v656
      %762 = vmatpush.msra.mxu0 %v654
      %763 = vmatmul.f32.gmra.mxu0 %v686
      %v764 = vpop.f32.mrf.mxu0
      %v765 = vadd.f32 %v745, %v764
      %766 = vdwg.mxu0
      %v767 = vlaneseq
      %v768 = vshrl.u32 %v767, 7
      %v769 = vrot.slane %v725, 4
      %v770 = vmax.f32 %v725, %v769
      %v771 = vrot.slane %v770, 2
      %v772 = vmax.f32 %v770, %v771
      %v773 = vrot.slane %v772, 1
      %v774 = vmax.f32 %v772, %v773
      %v775 = vrot.slane %v765, 4
      %v776 = vmax.f32 %v765, %v775
      %v777 = vrot.slane %v776, 2
      %v778 = vmax.f32 %v776, %v777
      %v779 = vrot.slane %v778, 1
      %v780 = vmax.f32 %v778, %v779
      %vm781 = vcmp.eq.f32.partialorder %v725, %v774
      %vm782 = vcmp.eq.f32.partialorder %v765, %v780
      %v783 = vsel %vm781, %v768, 8
      %v784 = vsel %vm782, %v768, 8
      %v785 = vrot.slane %v783, 4
      %vm786 = vcmp.lt.s32.totalorder %v783, %v785
      %v787 = vsel %vm786, %v783, %v785
      %v788 = vrot.slane %v787, 2
      %vm789 = vcmp.lt.s32.totalorder %v787, %v788
      %v790 = vsel %vm789, %v787, %v788
      %v791 = vrot.slane %v790, 1
      %vm792 = vcmp.lt.s32.totalorder %v790, %v791
      %v793 = vsel %vm792, %v790, %v791
      %v794 = vrot.slane %v784, 4
      %vm795 = vcmp.lt.s32.totalorder %v784, %v794
      %v796 = vsel %vm795, %v784, %v794
      %v797 = vrot.slane %v796, 2
      %vm798 = vcmp.lt.s32.totalorder %v796, %v797
      %v799 = vsel %vm798, %v796, %v797
      %v800 = vrot.slane %v799, 1
      %vm801 = vcmp.lt.s32.totalorder %v799, %v800
      %v802 = vsel %vm801, %v799, %v800
      %vm803 = vcmp.eq.s32.totalorder %v768, %v793
      %vm804 = vcmp.eq.s32.totalorder %v768, %v802
      %v805 = vsel %vm803, -1e+30, %v725
      %v806 = vsel %vm804, -1e+30, %v765
      %v807 = vrot.slane %v805, 4
      %v808 = vmax.f32 %v805, %v807
      %v809 = vrot.slane %v808, 2
      %v810 = vmax.f32 %v808, %v809
      %v811 = vrot.slane %v810, 1
      %v812 = vmax.f32 %v810, %v811
      %v813 = vrot.slane %v806, 4
      %v814 = vmax.f32 %v806, %v813
      %v815 = vrot.slane %v814, 2
      %v816 = vmax.f32 %v814, %v815
      %v817 = vrot.slane %v816, 1
      %v818 = vmax.f32 %v816, %v817
      %vm819 = vcmp.eq.f32.partialorder %v805, %v812
      %vm820 = vcmp.eq.f32.partialorder %v806, %v818
      %v821 = vsel %vm819, %v768, 8
      %v822 = vsel %vm820, %v768, 8
      %v823 = vrot.slane %v821, 4
      %vm824 = vcmp.lt.s32.totalorder %v821, %v823
      %v825 = vsel %vm824, %v821, %v823
      %v826 = vrot.slane %v825, 2
      %vm827 = vcmp.lt.s32.totalorder %v825, %v826
      %v828 = vsel %vm827, %v825, %v826
      %v829 = vrot.slane %v828, 1
      %vm830 = vcmp.lt.s32.totalorder %v828, %v829
      %v831 = vsel %vm830, %v828, %v829
      %v832 = vrot.slane %v822, 4
      %vm833 = vcmp.lt.s32.totalorder %v822, %v832
      %v834 = vsel %vm833, %v822, %v832
      %v835 = vrot.slane %v834, 2
      %vm836 = vcmp.lt.s32.totalorder %v834, %v835
      %v837 = vsel %vm836, %v834, %v835
      %v838 = vrot.slane %v837, 1
      %vm839 = vcmp.lt.s32.totalorder %v837, %v838
      %v840 = vsel %vm839, %v837, %v838
      %vm841 = vcmp.eq.s32.totalorder %v768, %v831
      %vm842 = vcmp.eq.s32.totalorder %v768, %v840
      %vm843 = vmor %vm803, %vm841
      %vm844 = vmor %vm804, %vm842
      %v845 = vsel %vm841, -1e+30, %v805
      %v846 = vsel %vm842, -1e+30, %v806
      %v847 = vrot.slane %v845, 4
      %v848 = vmax.f32 %v845, %v847
      %v849 = vrot.slane %v848, 2
      %v850 = vmax.f32 %v848, %v849
      %v851 = vrot.slane %v850, 1
      %v852 = vmax.f32 %v850, %v851
      %v853 = vrot.slane %v846, 4
      %v854 = vmax.f32 %v846, %v853
      %v855 = vrot.slane %v854, 2
      %v856 = vmax.f32 %v854, %v855
      %v857 = vrot.slane %v856, 1
      %v858 = vmax.f32 %v856, %v857
      %vm859 = vcmp.eq.f32.partialorder %v845, %v852
      %vm860 = vcmp.eq.f32.partialorder %v846, %v858
      %v861 = vsel %vm859, %v768, 8
      %v862 = vsel %vm860, %v768, 8
      %v863 = vrot.slane %v861, 4
      %vm864 = vcmp.lt.s32.totalorder %v861, %v863
      %v865 = vsel %vm864, %v861, %v863
      %v866 = vrot.slane %v865, 2
      %vm867 = vcmp.lt.s32.totalorder %v865, %v866
      %v868 = vsel %vm867, %v865, %v866
      %v869 = vrot.slane %v868, 1
      %vm870 = vcmp.lt.s32.totalorder %v868, %v869
      %v871 = vsel %vm870, %v868, %v869
      %v872 = vrot.slane %v862, 4
      %vm873 = vcmp.lt.s32.totalorder %v862, %v872
      %v874 = vsel %vm873, %v862, %v872
      %v875 = vrot.slane %v874, 2
      %vm876 = vcmp.lt.s32.totalorder %v874, %v875
      %v877 = vsel %vm876, %v874, %v875
      %v878 = vrot.slane %v877, 1
      %vm879 = vcmp.lt.s32.totalorder %v877, %v878
      %v880 = vsel %vm879, %v877, %v878
      %vm881 = vcmp.eq.s32.totalorder %v768, %v871
      %vm882 = vcmp.eq.s32.totalorder %v768, %v880
      %vm883 = vmor %vm843, %vm881
      %vm884 = vmor %vm844, %vm882
      %v885 = vsel %vm881, -1e+30, %v845
      %v886 = vsel %vm882, -1e+30, %v846
      %v887 = vrot.slane %v885, 4
      %v888 = vmax.f32 %v885, %v887
      %v889 = vrot.slane %v888, 2
      %v890 = vmax.f32 %v888, %v889
      %v891 = vrot.slane %v890, 1
      %v892 = vmax.f32 %v890, %v891
      %v893 = vrot.slane %v886, 4
      %v894 = vmax.f32 %v886, %v893
      %v895 = vrot.slane %v894, 2
      %v896 = vmax.f32 %v894, %v895
      %v897 = vrot.slane %v896, 1
      %v898 = vmax.f32 %v896, %v897
      %vm899 = vcmp.eq.f32.partialorder %v885, %v892
      %vm900 = vcmp.eq.f32.partialorder %v886, %v898
      %v901 = vsel %vm899, %v768, 8
      %v902 = vsel %vm900, %v768, 8
      %v903 = vrot.slane %v901, 4
      %vm904 = vcmp.lt.s32.totalorder %v901, %v903
      %v905 = vsel %vm904, %v901, %v903
      %v906 = vrot.slane %v905, 2
      %vm907 = vcmp.lt.s32.totalorder %v905, %v906
      %v908 = vsel %vm907, %v905, %v906
      %v909 = vrot.slane %v908, 1
      %vm910 = vcmp.lt.s32.totalorder %v908, %v909
      %v911 = vsel %vm910, %v908, %v909
      %v912 = vrot.slane %v902, 4
      %vm913 = vcmp.lt.s32.totalorder %v902, %v912
      %v914 = vsel %vm913, %v902, %v912
      %v915 = vrot.slane %v914, 2
      %vm916 = vcmp.lt.s32.totalorder %v914, %v915
      %v917 = vsel %vm916, %v914, %v915
      %v918 = vrot.slane %v917, 1
      %vm919 = vcmp.lt.s32.totalorder %v917, %v918
      %v920 = vsel %vm919, %v917, %v918
      %vm921 = vcmp.eq.s32.totalorder %v768, %v911
      %vm922 = vcmp.eq.s32.totalorder %v768, %v920
      %vm923 = vmor %vm883, %vm921
      %vm924 = vmor %vm884, %vm922
      %v925 = vsub.f32 %v725, %v774
      %v926 = vsub.f32 %v765, %v780
      %v927 = vmul.f32 %v925, 1.442695
      %v928 = vpow.pop %v927
      %v929 = vmul.f32 %v926, 1.442695
      %v930 = vpow.pop %v929
      %v931 = vsel %vm923, %v928, 0.0
      %v932 = vsel %vm924, %v930, 0.0
      %v933 = vrot.slane %v931, 4
      %v934 = vadd.f32 %v931, %v933
      %v935 = vrot.slane %v934, 2
      %v936 = vadd.f32 %v934, %v935
      %v937 = vrot.slane %v936, 1
      %v938 = vadd.f32 %v936, %v937
      %v939 = vrot.slane %v932, 4
      %v940 = vadd.f32 %v932, %v939
      %v941 = vrot.slane %v940, 2
      %v942 = vadd.f32 %v940, %v941
      %v943 = vrot.slane %v942, 1
      %v944 = vadd.f32 %v942, %v943
      %v945 = vrcp.pop %v938
      %v946 = vrcp.pop %v944
      %v947 = vmul.f32 %v938, %v945
      %v948 = vmul.f32 %v944, %v946
      %v949 = vsub.f32 2.0, %v947
      %v950 = vsub.f32 2.0, %v948
      %v951 = vmul.f32 %v945, %v949
      %v952 = vmul.f32 %v946, %v950
      %v953 = vmul.f32 %v931, %v951
      %v954 = vmul.f32 %v932, %v952
      %v955 = vadd.f32 %v953, 1e-16
      %v956 = vadd.f32 %v954, 1e-16
      %957 = vst [vmem:[%s242] sm:$0xff] %v955
      %958 = vst [vmem:[%s242 + $0x8] sm:$0xff] %v956
      %959 = vst [vmem:[#allocation1] ss:$2 sm:$0xff] %v256
      %v960 = vld.sshfl [vmem:[#allocation1] sm:$0xff pattern:$0x75316420]
      %v961 = vld.sshfl [vmem:[#allocation1 + $0x8] sm:$0xff pattern:$0x75316420]
      %964 = vmatpush.xpose.msra.mxu0 0.0
      %965 = vmatpush.xpose.msra.mxu0 0.0
      %966 = vmatpush.xpose.msra.mxu0 0.0
      %967 = vmatpush.xpose.msra.mxu0 0.0
      %968 = vmatpush.xpose.msra.mxu0 0.0
      %969 = vmatpush.xpose.msra.mxu0 0.0
      %970 = vmatpush.xpose.msra.mxu0 0.0
      %971 = vmatpush.xpose.msra.mxu0 0.0
      %972 = vmatpush.xpose.msra.mxu0 0.0
      %973 = vmatpush.xpose.msra.mxu0 0.0
      %974 = vmatpush.xpose.msra.mxu0 0.0
      %975 = vmatpush.xpose.msra.mxu0 0.0
      %976 = vmatpush.xpose.msra.mxu0 0.0
      %977 = vmatpush.xpose.msra.mxu0 0.0
      %978 = vmatpush.xpose.msra.mxu0 0.0
      %979 = vmatpush.xpose.msra.mxu0 %v955
      %980 = vmatmul.f32.gmra.mxu0 %v960
      %v981 = vpop.f32.mrf.mxu0
      %v982 = vadd.f32 0.0, %v981
      %983 = vdwg.mxu0
      %984 = vmatpush.xpose.msra.mxu0 0.0
      %985 = vmatpush.xpose.msra.mxu0 0.0
      %986 = vmatpush.xpose.msra.mxu0 0.0
      %987 = vmatpush.xpose.msra.mxu0 0.0
      %988 = vmatpush.xpose.msra.mxu0 0.0
      %989 = vmatpush.xpose.msra.mxu0 0.0
      %990 = vmatpush.xpose.msra.mxu0 0.0
      %991 = vmatpush.xpose.msra.mxu0 0.0
      %992 = vmatpush.xpose.msra.mxu0 0.0
      %993 = vmatpush.xpose.msra.mxu0 0.0
      %994 = vmatpush.xpose.msra.mxu0 0.0
      %995 = vmatpush.xpose.msra.mxu0 0.0
      %996 = vmatpush.xpose.msra.mxu0 0.0
      %997 = vmatpush.xpose.msra.mxu0 0.0
      %998 = vmatpush.xpose.msra.mxu0 0.0
      %999 = vmatpush.xpose.msra.mxu0 %v956
      %1000 = vmatmul.f32.gmra.mxu0 %v961
      %v1001 = vpop.f32.mrf.mxu0
      %v1002 = vadd.f32 %v982, %v1001
      %1003 = vdwg.mxu0
      %p1004 = scmp.eq.s32.totalorder %s21, 0
      // Predicated region
      $region33: #{color_cnn_plus_forward.2} parent=31 // pred_check
        %p1005 = pneg %p1004
      $region34: #{color_cnn_plus_forward.2} parent=31 // pred_check_branch
        %1007 = sbr.rel (%p1005) target = $region36
      $region35: #{color_cnn_plus_forward.2} parent=31 // pred_region
        %vm1008 = vcmask 60416
        %1009 = vst.msk [vmem:[#allocation3] sm:$0xf] %vm1008, 0.0
      $region36: #{color_cnn_plus_forward.2} parent=31 // pred_fallthru
        _
      %v1010 = vld [vmem:[#allocation3] sm:$0xf]
      %v1011 = vadd.f32 %v1010, %v1002
      %vm1012 = vcmask 60416
      %1013 = vst.msk [vmem:[#allocation3] sm:$0xf] %vm1012, %v1011
      // Predicated region
      $region37: #{color_cnn_plus_forward.2} parent=31 // pred_check
        %p1014 = pneg %p1004
      $region38: #{color_cnn_plus_forward.2} parent=31 // pred_check_branch
        %1016 = sbr.rel (%p1014) target = $region40
      $region39: #{color_cnn_plus_forward.2} parent=31 // pred_region
        %v1017 = vld [vmem:[#allocation3] sm:$0xf]
        %v1018 = vperm.slane %v1017, 3
        %v1019 = vrcp.pop %v1018
        %v1020 = vmul.f32 %v1018, %v1019
        %v1021 = vsub.f32 1.0, %v1020
        %v1022 = vmul.f32 %v1019, %v1021
        %v1023 = vadd.f32 %v1019, %v1022
        %vm1024 = vweird.f32 %v1018
        %vm1025 = vweird.f32 %v1019
        %vm1026 = vmor %vm1024, %vm1025
        %v1027 = vsel %vm1026, %v1019, %v1023
        %v1028 = vand.u32 2147483647, %v1018
        %vm1029 = vcmp.eq.f32.partialorder %v1028, 8.507059e+37
        %v1030 = vand.u32 %v1018, 2147483648
        %v1031 = vor.u32 1.1754944e-38, %v1030
        %v1032 = vsel %vm1029, %v1031, %v1027
        %v1033 = vmul.f32 %v1017, %v1032
        %vm1034 = vcmask 59392
        %1035 = vst.msk [vmem:[%s247] sm:$0x7] %vm1034, %v1033
      $region40: #{color_cnn_plus_forward.2} parent=31 // pred_fallthru
        _
      %s1036 = smul.u32 2, %s21
      %p1037 = scmp.lt.s32.totalorder %s20, 1
      %s1038 = scalar_select %p1037, %s20, 1
      %p1039 = scmp.lt.s32.totalorder %s1036, 1
      %s1040 = scalar_select %p1039, %s1036, 1
      %s1041 = smul.addr %s1038, 2
      %s1042 = sadd.s32 %s1040, %s1041
      %s1043 = smul.addr %s1042, 8
      %s1044 = scalar_lea.vmem %s3, %s1043
      %p1045 = scmp.lt.s32.totalorder %s20, 1
      %s1046 = scalar_select %p1045, %s20, 1
      %s1047 = smul.addr %s1046, 4
      %s1048 = scalar_lea.vmem %s4, %s1047
      // Predicated region
      $region41: #{color_cnn_plus_forward.2} parent=31 // pred_check
        %p1049 = pneg %p118
      $region42: #{color_cnn_plus_forward.2} parent=31 // pred_check_branch
        %1051 = sbr.rel (%p1049) target = $region44
      $region43: #{color_cnn_plus_forward.2} parent=31 // pred_region
        %s1052 = smul.u32 2, %s21
      $region44: #{color_cnn_plus_forward.2} parent=31 // pred_fallthru
        _
      // Predicated region
      $region45: #{color_cnn_plus_forward.2} parent=31 // pred_check
        %p1053 = pneg %p144
      $region46: #{color_cnn_plus_forward.2} parent=31 // pred_check_branch
        %1055 = sbr.rel (%p1053) target = $region48
      $region47: #{color_cnn_plus_forward.2} parent=31 // pred_region
        _
      $region48: #{color_cnn_plus_forward.2} parent=31 // pred_fallthru
        _
    $region32: #{color_cnn_plus_forward.2} parent=5 // pred_fallthru
      _
    %p1056 = scmp.le.s32.totalorder 2, %s11
    // Predicated region
    $region49: #{color_cnn_plus_forward.2} parent=5 // pred_check
      %p1057 = pneg %p1056
    $region50: #{color_cnn_plus_forward.2} parent=5 // pred_check_branch
      %1059 = sbr.rel (%p1057) target = $region52
    $region51: #{color_cnn_plus_forward.2} parent=5 // pred_region
      %s1060 = ssub.s32 %s11, 2
      // Predicated region
      $region53: #{color_cnn_plus_forward.2} parent=51 // pred_check
        %p1061 = pneg %p124
      $region54: #{color_cnn_plus_forward.2} parent=51 // pred_check_branch
        %1063 = sbr.rel (%p1061) target = $region56
      $region55: #{color_cnn_plus_forward.2} parent=51 // pred_region
        %s1064 = smul.u32 2, %s23
        %p1065 = scmp.lt.s32.totalorder %s22, 1
        %s1066 = scalar_select %p1065, %s22, 1
        %p1067 = scmp.lt.s32.totalorder %s1064, 1
        %s1068 = scalar_select %p1067, %s1064, 1
        %s1069 = smul.addr %s1066, 2
        %s1070 = sadd.s32 %s1068, %s1069
        %s1071 = smul.addr %s1070, 8
        %s1072 = scalar_lea.vmem %s3, %s1071
      $region56: #{color_cnn_plus_forward.2} parent=51 // pred_fallthru
        _
      // Predicated region
      $region57: #{color_cnn_plus_forward.2} parent=51 // pred_check
        %p1073 = pneg %p150
      $region58: #{color_cnn_plus_forward.2} parent=51 // pred_check_branch
        %1075 = sbr.rel (%p1073) target = $region60
      $region59: #{color_cnn_plus_forward.2} parent=51 // pred_region
        %p1076 = scmp.lt.s32.totalorder %s22, 1
        %s1077 = scalar_select %p1076, %s22, 1
        %s1078 = smul.addr %s1077, 4
        %s1079 = scalar_lea.vmem %s4, %s1078
      $region60: #{color_cnn_plus_forward.2} parent=51 // pred_fallthru
        _
    $region52: #{color_cnn_plus_forward.2} parent=5 // pred_fallthru
      _
  $region6: #{color_cnn_plus_forward.2} parent=0 // loop_footer
    %s15 = sadd.s32 1, %s11
  $region7: #{color_cnn_plus_forward.2} parent=0 // loop_footer_branch
    %10 = sbr.rel target = $region3
  $region8: #{color_cnn_plus_forward.2} parent=0 // loop_exit
    _

</llo_original>
